<compile_context>
chip_gen: v7x
topology: tpu7x:2x2x1
jax: 0.10.0
libtpu: 0.0.40
codegen_flags: <defaults>
</compile_context>

<pallas_src>
import numpy as np
import jax
import jax.numpy as jnp
from jax.experimental import pallas as pl
from jax.experimental.pallas import tpu as pltpu

EPS = 1e-6


# ----------------------------------------------------------------------------- kernel helpers
def _groupnorm_silu(h, gamma, beta, n_groups, n_images, pix, img_bias=None):
    """GroupNorm(eps=1e-6, affine) + SiLU on a channels-first (C, n_images*pix) f32 slab.

    gamma, beta : (C, 1) per-channel affine
    img_bias    : optional (C, n_images) per-image bias folded into the input
                  (conv1_bias + time_emb, added before norm2 statistics).
    Statistics are per (image, group): static slices + lane/sublane reductions on
    the VPU/XLU only - no MXU matmuls.
    Note: variance is E[x^2] - E[x]^2 in f32 (single pass); fine at activation
    scales, switch to a mean-subtracted two-pass form for unnormalized inputs.
    """
    C = h.shape[0]
    cpg = C // n_groups
    inv_cnt = 1.0 / float(cpg * pix)
    img_parts = []
    for b in range(n_images):
        hb_img = h[:, b * pix:(b + 1) * pix]                           # (C, pix)
        if img_bias is not None:
            hb_img = hb_img + img_bias[:, b:b + 1]
        grp_parts = []
        for g in range(n_groups):
            hg = hb_img[g * cpg:(g + 1) * cpg, :]                      # (cpg, pix)
            s = jnp.sum(hg, axis=1, keepdims=True)                     # (cpg, 1) lane reduce
            sq = jnp.sum(hg * hg, axis=1, keepdims=True)               # (cpg, 1)
            mean = jnp.sum(s, axis=0, keepdims=True) * inv_cnt         # (1, 1)
            var = jnp.sum(sq, axis=0, keepdims=True) * inv_cnt - mean * mean
            rstd = jax.lax.rsqrt(var + EPS)                            # (1, 1)
            ga = gamma[g * cpg:(g + 1) * cpg]                          # (cpg, 1)
            be = beta[g * cpg:(g + 1) * cpg]
            y = (hg - mean) * (rstd * ga) + be
            grp_parts.append(y * jax.nn.sigmoid(y))                    # SiLU
        img_parts.append(jnp.concatenate(grp_parts, axis=0)
                         if n_groups > 1 else grp_parts[0])
    return jnp.concatenate(img_parts, axis=1) if n_images > 1 else img_parts[0]


def _conv3x3(h, w_ref, mask_ref, W):
    """3x3 conv (stride 1, pad 1) on a channels-first (C, N = n_images*H*W) f32 slab.

    Each tap is a lane-roll of the flat spatial axis (XLU) zeroed at image borders
    (and across image boundaries) by a precomputed mask, cast to bf16 per tap, and
    stacked along the channel axis: the conv is a single (Cout, 9C) x (9C, N) bf16
    MXU matmul with f32 accumulation.  No bias is added here.
    """
    C, N = h.shape
    taps = []
    for dy in range(3):
        for dx in range(3):
            off = (dy - 1) * W + (dx - 1)
            if off == 0:
                taps.append(h.astype(jnp.bfloat16))          # centre tap: no shift/mask
            else:
                r = pltpu.roll(h, shift=(-off) % N, axis=1)   # r[:, p] = h[:, p + off]
                # Mask multiply in f32 (portable to v5e's f32-only VALU), cast per tap
                # so the concatenated patch matrix is built directly in bf16.
                taps.append((r * mask_ref[dy * 3 + dx]).astype(jnp.bfloat16))
    # TODO(synk): pad the per-tap channel count to a multiple of 16 (bf16 sublane tile)
    # when Cin is small so the stacked taps land at aligned sublane offsets.
    patches = jnp.concatenate(taps, axis=0)                              # (9C, N) bf16
    return jnp.dot(w_ref[...], patches, preferred_element_type=jnp.float32)


# ----------------------------------------------------------------------------- fused kernel
def _make_resblock_kernel(W, pix, n_images, n_groups, has_projection):
    def kernel(x_ref, b1te_ref, mask_ref, vin_ref, w1_ref, vout_ref, w2_ref, *rest):
        if has_projection:
            ws_ref, out_ref = rest
        else:
            (out_ref,) = rest

        x = x_ref[...]                                                   # (Cin, N) f32

        # h = conv1(act1(norm1(x)))   (conv1 bias folded into the norm2 input below)
        h = _groupnorm_silu(x, vin_ref[:, 0:1], vin_ref[:, 1:2],
                            n_groups, n_images, pix)
        h = _conv3x3(h, w1_ref, mask_ref, W)                             # (Cout, N)

        # h = conv2(dropout(act2(norm2(h + conv1_b + time_emb(t)))))
        # TODO(synk): nn.Dropout implemented as identity (eval mode); training-mode RNG dropout omitted.
        h = _groupnorm_silu(h, vout_ref[:, 0:1], vout_ref[:, 1:2],
                            n_groups, n_images, pix, img_bias=b1te_ref[0])
        h = _conv3x3(h, w2_ref, mask_ref, W)

        # out = h + (conv2_b + sc_b) + shortcut(x)
        if has_projection:
            sc = jnp.dot(ws_ref[...], x.astype(jnp.bfloat16),
                         preferred_element_type=jnp.float32)
        else:
            sc = x
        out_ref[...] = (h + sc + vout_ref[:, 2:3]).astype(out_ref.dtype)

    return kernel


# ----------------------------------------------------------------------------- wrapper
def _pick_batch_block(B):
    """Images per lane block: as large as possible while keeping >= 2 grid blocks
    (so both v7x TensorCores get work).  B <= 2 -> one image per block."""
    if B <= 2:
        return 1
    for cand in range(B // 2, 0, -1):
        if B % cand == 0:
            return cand
    return 1


def residual_block_forward(x_nchw, t, raw, *, batch_block=None, out_dtype=jnp.float32):
    """Fused ResidualBlock forward.

    `raw` holds the PyTorch-layout parameters:
      gn1_w/gn1_b (Cin,), conv1_w (Cout,Cin,3,3), conv1_b (Cout,),
      lin_w (Cout,Tc), lin_b (Cout,), gn2_w/gn2_b (Cout,),
      conv2_w (Cout,Cout,3,3), conv2_b (Cout,),
      sc_w (Cout,Cin,1,1), sc_b (Cout,)  [only when Cin != Cout], and G.
    """
    B, Cin, H, W = x_nchw.shape
    Cout = raw["conv1_w"].shape[0]
    G = raw["G"]
    P = H * W
    has_projection = Cin != Cout
    bblk = _pick_batch_block(B) if batch_block is None else batch_block
    assert B % bblk == 0
    n_blocks = B // bblk
    N = bblk * P

    # Channels-first with the batch folded into the lane axis: (Cin, B*P).
    x = jnp.transpose(x_nchw.astype(jnp.float32), (1, 0, 2, 3)).reshape(Cin, B * P)

    # conv1 bias + time-embedding projection: one (Cout,) vector per image,
    # laid out per lane block as (n_blocks, Cout, bblk).
    te = t.astype(jnp.float32) @ raw["lin_w"].T + raw["lin_b"] + raw["conv1_b"]   # (B, Cout)
    b1te = te.reshape(n_blocks, bblk, Cout).transpose(0, 2, 1)

    # 3x3 weights as (Cout, 9*Cin) bf16, tap-major / channel-minor (im2col order).
    def conv_taps(w):
        o, i = w.shape[0], w.shape[1]
        return jnp.transpose(w, (0, 2, 3, 1)).reshape(o, 9 * i).astype(jnp.bfloat16)

    # Border-validity masks for the shifted taps, tiled per image in the block
    # (they also zero any cross-image lanes the roll wraps in).
    yy, xx = np.mgrid[0:H, 0:W]
    masks = np.stack([
        ((yy + dy - 1 >= 0) & (yy + dy - 1 < H) &
         (xx + dx - 1 >= 0) & (xx + dx - 1 < W)).reshape(-1)
        for dy in range(3) for dx in range(3)]).astype(np.float32)               # (9, P)
    masks = jnp.asarray(np.tile(masks, (1, bblk)).reshape(9, 1, N))

    # Packed per-channel vectors: (Cin, 2) = [gn1_w, gn1_b];
    # (Cout, 3) = [gn2_w, gn2_b, conv2_b (+ sc_b)].
    f32 = lambda v: jnp.asarray(v, jnp.float32)
    vin = jnp.stack([f32(raw["gn1_w"]), f32(raw["gn1_b"])], axis=1)
    out_bias = f32(raw["conv2_b"]) + (f32(raw["sc_b"]) if has_projection else 0.0)
    vout = jnp.stack([f32(raw["gn2_w"]), f32(raw["gn2_b"]), out_bias], axis=1)

    operands = [x, b1te, masks, vin, conv_taps(raw["conv1_w"]),
                vout, conv_taps(raw["conv2_w"])]
    if has_projection:
        operands.append(raw["sc_w"][:, :, 0, 0].astype(jnp.bfloat16))

    def rep(arr):   # replicated: whole array, same block every grid step
        return pl.BlockSpec(arr.shape, lambda i, n=arr.ndim: (0,) * n)

    in_specs = [
        pl.BlockSpec((Cin, N), lambda i: (0, i)),            # x lane block
        pl.BlockSpec((1, Cout, bblk), lambda i: (i, 0, 0)),   # per-image conv1_b + te
    ] + [rep(a) for a in operands[2:]]

    out = pl.pallas_call(
        _make_resblock_kernel(W, P, bblk, G, has_projection),
        out_shape=jax.ShapeDtypeStruct((Cout, B * P), out_dtype),
        grid_spec=pltpu.PrefetchScalarGridSpec(
            num_scalar_prefetch=0,
            grid=(n_blocks,),
            in_specs=in_specs,
            out_specs=pl.BlockSpec((Cout, N), lambda i: (0, i)),
        ),
        # TODO(synk): for realistic UNet sizes (C>=128, P>=4096) add a spatial lane grid
        # axis with a one-row halo (or masked edge recompute), switch the conv to the
        # 9-matmul accumulate form on v7x (MRB in-place accumulation avoids the (9C,N)
        # bf16 patch slab), and set pltpu.CompilerParams(vmem_limit_bytes=...) so the
        # per-step working set stays inside v7x's 64 MiB VMEM; defaults suffice here.
        compiler_params=pltpu.CompilerParams(dimension_semantics=("parallel",)),
    )(*operands)

    return out.reshape(Cout, B, H, W).transpose(1, 0, 2, 3)


# ----------------------------------------------------------------------------- init & reference
def ddpm_uniform_init(key, shape, scale=1.0, in_axis=1, out_axis=0):
    """variance_scaling(scale, 'fan_avg', 'uniform') — same math as the PyTorch port."""
    shape = tuple(int(s) for s in shape)
    receptive = float(np.prod(shape)) / (shape[in_axis] * shape[out_axis])
    fan_in = shape[in_axis] * receptive
    fan_out = shape[out_axis] * receptive
    variance = scale / ((fan_in + fan_out) / 2.0)
    return jax.random.uniform(key, shape, jnp.float32, -1.0, 1.0) * np.sqrt(3.0 * variance)


def reference_forward(x_nchw, t, raw):
    """Pure-JAX (f32) reference mirroring the PyTorch module (eval-mode dropout)."""
    G = raw["G"]

    def gn(x, gamma, beta):
        B, C, H, W = x.shape
        xg = x.reshape(B, G, (C // G) * H * W)
        mean = xg.mean(axis=2, keepdims=True)
        var = xg.var(axis=2, keepdims=True)
        xn = ((xg - mean) * jax.lax.rsqrt(var + EPS)).reshape(B, C, H, W)
        return xn * gamma[None, :, None, None] + beta[None, :, None, None]

    silu = lambda v: v * jax.nn.sigmoid(v)

    def conv(x, w, b, pad):
        y = jax.lax.conv_general_dilated(
            x, w, window_strides=(1, 1), padding=((pad, pad), (pad, pad)),
            dimension_numbers=("NCHW", "OIHW", "NCHW"))
        return y + b[None, :, None, None]

    h = conv(silu(gn(x_nchw, raw["gn1_w"], raw["gn1_b"])), raw["conv1_w"], raw["conv1_b"], 1)
    h = h + (t @ raw["lin_w"].T + raw["lin_b"])[:, :, None, None]
    h = conv(silu(gn(h, raw["gn2_w"], raw["gn2_b"])), raw["conv2_w"], raw["conv2_b"], 1)
    sc = conv(x_nchw, raw["sc_w"], raw["sc_b"], 0) if "sc_w" in raw else x_nchw
    return h + sc


# ----------------------------------------------------------------------------- main
if __name__ == "__main__":
    H, W, Tc, G = 16, 16, 32, 4   # n_groups=4 so the small channel counts divide evenly

    def run_case(key, B, cin, cout):
        ks = jax.random.split(key, 14)
        x = jax.random.normal(ks[0], (B, cin, H, W), jnp.float32)
        t = jax.random.normal(ks[1], (B, Tc), jnp.float32)
        # Parameters use non-trivial values (instead of the module's 1/0 init) so the
        # affine / bias paths are actually exercised by the check.
        raw = dict(
            G=G,
            gn1_w=1.0 + 0.3 * jax.random.normal(ks[2], (cin,), jnp.float32),
            gn1_b=0.2 * jax.random.normal(ks[3], (cin,), jnp.float32),
            conv1_w=ddpm_uniform_init(ks[4], (cout, cin, 3, 3)),
            conv1_b=0.1 * jax.random.normal(ks[5], (cout,), jnp.float32),
            lin_w=ddpm_uniform_init(ks[6], (cout, Tc)),
            lin_b=0.1 * jax.random.normal(ks[7], (cout,), jnp.float32),
            gn2_w=1.0 + 0.3 * jax.random.normal(ks[8], (cout,), jnp.float32),
            gn2_b=0.2 * jax.random.normal(ks[9], (cout,), jnp.float32),
            conv2_w=ddpm_uniform_init(ks[10], (cout, cout, 3, 3)),
            conv2_b=0.1 * jax.random.normal(ks[11], (cout,), jnp.float32),
        )
        if cin != cout:
            raw["sc_w"] = ddpm_uniform_init(ks[12], (cout, cin, 1, 1))
            raw["sc_b"] = 0.1 * jax.random.normal(ks[13], (cout,), jnp.float32)

        out = jax.block_until_ready(residual_block_forward(x, t, raw))
        assert out.shape == (B, cout, H, W), out.shape
        ref = reference_forward(x, t, raw)
        # Kernel uses bf16 MXU operands (f32 accumulation) vs an all-f32 reference,
        # so allow a bf16-sized absolute tolerance; real bugs produce O(1) errors.
        max_err = float(jnp.max(jnp.abs(out - ref)))
        assert max_err < 1e-1, f"max abs err {max_err}"

    k0, k1 = jax.random.split(jax.random.PRNGKey(0))
    run_case(k0, 2, 8, 16)    # Cin != Cout -> 1x1 shortcut matmul; bblk=1, grid=2
    run_case(k1, 4, 16, 16)   # Cin == Cout -> identity shortcut; bblk=2 (2 images/lane block)

    print("KERNEL_OK")
</pallas_src>

<mosaic_0001>
module attributes {stable_mosaic.version = 11 : i64} {
  func.func @kernel(%arg0: i32, %arg1: memref<8x256xf32, #tpu.memory_space<vmem>>, %arg2: memref<1x16x1xf32, #tpu.memory_space<vmem>>, %arg3: memref<9x1x256xf32, #tpu.memory_space<vmem>>, %arg4: memref<8x2xf32, #tpu.memory_space<vmem>>, %arg5: memref<16x72xbf16, #tpu.memory_space<vmem>>, %arg6: memref<16x3xf32, #tpu.memory_space<vmem>>, %arg7: memref<16x144xbf16, #tpu.memory_space<vmem>>, %arg8: memref<16x8xbf16, #tpu.memory_space<vmem>>, %arg9: memref<16x256xf32, #tpu.memory_space<vmem>>) attributes {dimension_semantics = [#tpu.dimension_semantics<parallel>], iteration_bounds = array<i64: 2>, scalar_prefetch = 0 : i64, scratch_operands = 0 : i64, tpu.core_type = #tpu.core_type<tc>, window_params = [{transform_indices = @transform_0, window_bounds = array<i64: 8, 256>}, {transform_indices = @transform_1, window_bounds = array<i64: 1, 16, 1>}, {pipeline_mode = #tpu.pipeline_mode<synchronous>, transform_indices = @transform_2, window_bounds = array<i64: 9, 1, 256>}, {pipeline_mode = #tpu.pipeline_mode<synchronous>, transform_indices = @transform_3, window_bounds = array<i64: 8, 2>}, {pipeline_mode = #tpu.pipeline_mode<synchronous>, transform_indices = @transform_4, window_bounds = array<i64: 16, 72>}, {pipeline_mode = #tpu.pipeline_mode<synchronous>, transform_indices = @transform_5, window_bounds = array<i64: 16, 3>}, {pipeline_mode = #tpu.pipeline_mode<synchronous>, transform_indices = @transform_6, window_bounds = array<i64: 16, 144>}, {pipeline_mode = #tpu.pipeline_mode<synchronous>, transform_indices = @transform_7, window_bounds = array<i64: 16, 8>}, {transform_indices = @transform_8, window_bounds = array<i64: 16, 256>}]} {
    %c0 = arith.constant 0 : index
    %c0_0 = arith.constant 0 : index
    %0 = vector.load %arg1[%c0, %c0_0] : memref<8x256xf32, #tpu.memory_space<vmem>>, vector<8x256xf32>
    %c0_1 = arith.constant 0 : index
    %c0_2 = arith.constant 0 : index
    %1 = vector.load %arg4[%c0_1, %c0_2] : memref<8x2xf32, #tpu.memory_space<vmem>>, vector<8x1xf32>
    %c0_3 = arith.constant 0 : index
    %c1 = arith.constant 1 : index
    %2 = vector.load %arg4[%c0_3, %c1] : memref<8x2xf32, #tpu.memory_space<vmem>>, vector<8x1xf32>
    %3 = vector.extract_strided_slice %0 {offsets = [0, 0], sizes = [2, 256], strides = [1, 1]} : vector<8x256xf32> to vector<2x256xf32>
    %cst = arith.constant dense<0.000000e+00> : vector<2xf32>
    %4 = vector.multi_reduction <add>, %3, %cst [1] : vector<2x256xf32> to vector<2xf32>
    %5 = vector.shape_cast %4 : vector<2xf32> to vector<2x1xf32>
    %6 = arith.mulf %3, %3 : vector<2x256xf32>
    %cst_4 = arith.constant dense<0.000000e+00> : vector<2xf32>
    %7 = vector.multi_reduction <add>, %6, %cst_4 [1] : vector<2x256xf32> to vector<2xf32>
    %8 = vector.shape_cast %7 : vector<2xf32> to vector<2x1xf32>
    %cst_5 = arith.constant dense<0.000000e+00> : vector<1xf32>
    %9 = vector.multi_reduction <add>, %5, %cst_5 [0] : vector<2x1xf32> to vector<1xf32>
    %10 = vector.shape_cast %9 : vector<1xf32> to vector<1x1xf32>
    %cst_6 = arith.constant 0.001953125 : f32
    %11 = vector.broadcast %cst_6 : f32 to vector<1x1xf32>
    %12 = arith.mulf %10, %11 : vector<1x1xf32>
    %cst_7 = arith.constant dense<0.000000e+00> : vector<1xf32>
    %13 = vector.multi_reduction <add>, %8, %cst_7 [0] : vector<2x1xf32> to vector<1xf32>
    %14 = vector.shape_cast %13 : vector<1xf32> to vector<1x1xf32>
    %cst_8 = arith.constant 0.001953125 : f32
    %15 = vector.broadcast %cst_8 : f32 to vector<1x1xf32>
    %16 = arith.mulf %14, %15 : vector<1x1xf32>
    %17 = arith.mulf %12, %12 : vector<1x1xf32>
    %18 = arith.subf %16, %17 : vector<1x1xf32>
    %cst_9 = arith.constant 9.99999997E-7 : f32
    %19 = vector.broadcast %cst_9 : f32 to vector<1x1xf32>
    %20 = arith.addf %18, %19 : vector<1x1xf32>
    %21 = math.rsqrt %20 : vector<1x1xf32>
    %22 = vector.extract_strided_slice %1 {offsets = [0, 0], sizes = [2, 1], strides = [1, 1]} : vector<8x1xf32> to vector<2x1xf32>
    %23 = vector.extract_strided_slice %2 {offsets = [0, 0], sizes = [2, 1], strides = [1, 1]} : vector<8x1xf32> to vector<2x1xf32>
    %24 = vector.broadcast %12 : vector<1x1xf32> to vector<2x256xf32>
    %25 = arith.subf %3, %24 : vector<2x256xf32>
    %26 = vector.broadcast %21 : vector<1x1xf32> to vector<2x1xf32>
    %27 = arith.mulf %26, %22 : vector<2x1xf32>
    %28 = vector.broadcast %27 : vector<2x1xf32> to vector<2x256xf32>
    %29 = arith.mulf %25, %28 : vector<2x256xf32>
    %30 = vector.broadcast %23 : vector<2x1xf32> to vector<2x256xf32>
    %31 = arith.addf %29, %30 : vector<2x256xf32>
    %32 = arith.negf %31 : vector<2x256xf32>
    %33 = math.exp %32 : vector<2x256xf32>
    %cst_10 = arith.constant 1.000000e+00 : f32
    %34 = vector.broadcast %cst_10 : f32 to vector<2x256xf32>
    %35 = arith.addf %34, %33 : vector<2x256xf32>
    %36 = arith.divf %34, %35 : vector<2x256xf32>
    %37 = arith.mulf %31, %36 : vector<2x256xf32>
    %38 = vector.extract_strided_slice %0 {offsets = [2, 0], sizes = [2, 256], strides = [1, 1]} : vector<8x256xf32> to vector<2x256xf32>
    %cst_11 = arith.constant dense<0.000000e+00> : vector<2xf32>
    %39 = vector.multi_reduction <add>, %38, %cst_11 [1] : vector<2x256xf32> to vector<2xf32>
    %40 = vector.shape_cast %39 : vector<2xf32> to vector<2x1xf32>
    %41 = arith.mulf %38, %38 : vector<2x256xf32>
    %cst_12 = arith.constant dense<0.000000e+00> : vector<2xf32>
    %42 = vector.multi_reduction <add>, %41, %cst_12 [1] : vector<2x256xf32> to vector<2xf32>
    %43 = vector.shape_cast %42 : vector<2xf32> to vector<2x1xf32>
    %cst_13 = arith.constant dense<0.000000e+00> : vector<1xf32>
    %44 = vector.multi_reduction <add>, %40, %cst_13 [0] : vector<2x1xf32> to vector<1xf32>
    %45 = vector.shape_cast %44 : vector<1xf32> to vector<1x1xf32>
    %cst_14 = arith.constant 0.001953125 : f32
    %46 = vector.broadcast %cst_14 : f32 to vector<1x1xf32>
    %47 = arith.mulf %45, %46 : vector<1x1xf32>
    %cst_15 = arith.constant dense<0.000000e+00> : vector<1xf32>
    %48 = vector.multi_reduction <add>, %43, %cst_15 [0] : vector<2x1xf32> to vector<1xf32>
    %49 = vector.shape_cast %48 : vector<1xf32> to vector<1x1xf32>
    %cst_16 = arith.constant 0.001953125 : f32
    %50 = vector.broadcast %cst_16 : f32 to vector<1x1xf32>
    %51 = arith.mulf %49, %50 : vector<1x1xf32>
    %52 = arith.mulf %47, %47 : vector<1x1xf32>
    %53 = arith.subf %51, %52 : vector<1x1xf32>
    %cst_17 = arith.constant 9.99999997E-7 : f32
    %54 = vector.broadcast %cst_17 : f32 to vector<1x1xf32>
    %55 = arith.addf %53, %54 : vector<1x1xf32>
    %56 = math.rsqrt %55 : vector<1x1xf32>
    %57 = vector.extract_strided_slice %1 {offsets = [2, 0], sizes = [2, 1], strides = [1, 1]} : vector<8x1xf32> to vector<2x1xf32>
    %58 = vector.extract_strided_slice %2 {offsets = [2, 0], sizes = [2, 1], strides = [1, 1]} : vector<8x1xf32> to vector<2x1xf32>
    %59 = vector.broadcast %47 : vector<1x1xf32> to vector<2x256xf32>
    %60 = arith.subf %38, %59 : vector<2x256xf32>
    %61 = vector.broadcast %56 : vector<1x1xf32> to vector<2x1xf32>
    %62 = arith.mulf %61, %57 : vector<2x1xf32>
    %63 = vector.broadcast %62 : vector<2x1xf32> to vector<2x256xf32>
    %64 = arith.mulf %60, %63 : vector<2x256xf32>
    %65 = vector.broadcast %58 : vector<2x1xf32> to vector<2x256xf32>
    %66 = arith.addf %64, %65 : vector<2x256xf32>
    %67 = arith.negf %66 : vector<2x256xf32>
    %68 = math.exp %67 : vector<2x256xf32>
    %cst_18 = arith.constant 1.000000e+00 : f32
    %69 = vector.broadcast %cst_18 : f32 to vector<2x256xf32>
    %70 = arith.addf %69, %68 : vector<2x256xf32>
    %71 = arith.divf %69, %70 : vector<2x256xf32>
    %72 = arith.mulf %66, %71 : vector<2x256xf32>
    %73 = vector.extract_strided_slice %0 {offsets = [4, 0], sizes = [2, 256], strides = [1, 1]} : vector<8x256xf32> to vector<2x256xf32>
    %cst_19 = arith.constant dense<0.000000e+00> : vector<2xf32>
    %74 = vector.multi_reduction <add>, %73, %cst_19 [1] : vector<2x256xf32> to vector<2xf32>
    %75 = vector.shape_cast %74 : vector<2xf32> to vector<2x1xf32>
    %76 = arith.mulf %73, %73 : vector<2x256xf32>
    %cst_20 = arith.constant dense<0.000000e+00> : vector<2xf32>
    %77 = vector.multi_reduction <add>, %76, %cst_20 [1] : vector<2x256xf32> to vector<2xf32>
    %78 = vector.shape_cast %77 : vector<2xf32> to vector<2x1xf32>
    %cst_21 = arith.constant dense<0.000000e+00> : vector<1xf32>
    %79 = vector.multi_reduction <add>, %75, %cst_21 [0] : vector<2x1xf32> to vector<1xf32>
    %80 = vector.shape_cast %79 : vector<1xf32> to vector<1x1xf32>
    %cst_22 = arith.constant 0.001953125 : f32
    %81 = vector.broadcast %cst_22 : f32 to vector<1x1xf32>
    %82 = arith.mulf %80, %81 : vector<1x1xf32>
    %cst_23 = arith.constant dense<0.000000e+00> : vector<1xf32>
    %83 = vector.multi_reduction <add>, %78, %cst_23 [0] : vector<2x1xf32> to vector<1xf32>
    %84 = vector.shape_cast %83 : vector<1xf32> to vector<1x1xf32>
    %cst_24 = arith.constant 0.001953125 : f32
    %85 = vector.broadcast %cst_24 : f32 to vector<1x1xf32>
    %86 = arith.mulf %84, %85 : vector<1x1xf32>
    %87 = arith.mulf %82, %82 : vector<1x1xf32>
    %88 = arith.subf %86, %87 : vector<1x1xf32>
    %cst_25 = arith.constant 9.99999997E-7 : f32
    %89 = vector.broadcast %cst_25 : f32 to vector<1x1xf32>
    %90 = arith.addf %88, %89 : vector<1x1xf32>
    %91 = math.rsqrt %90 : vector<1x1xf32>
    %92 = vector.extract_strided_slice %1 {offsets = [4, 0], sizes = [2, 1], strides = [1, 1]} : vector<8x1xf32> to vector<2x1xf32>
    %93 = vector.extract_strided_slice %2 {offsets = [4, 0], sizes = [2, 1], strides = [1, 1]} : vector<8x1xf32> to vector<2x1xf32>
    %94 = vector.broadcast %82 : vector<1x1xf32> to vector<2x256xf32>
    %95 = arith.subf %73, %94 : vector<2x256xf32>
    %96 = vector.broadcast %91 : vector<1x1xf32> to vector<2x1xf32>
    %97 = arith.mulf %96, %92 : vector<2x1xf32>
    %98 = vector.broadcast %97 : vector<2x1xf32> to vector<2x256xf32>
    %99 = arith.mulf %95, %98 : vector<2x256xf32>
    %100 = vector.broadcast %93 : vector<2x1xf32> to vector<2x256xf32>
    %101 = arith.addf %99, %100 : vector<2x256xf32>
    %102 = arith.negf %101 : vector<2x256xf32>
    %103 = math.exp %102 : vector<2x256xf32>
    %cst_26 = arith.constant 1.000000e+00 : f32
    %104 = vector.broadcast %cst_26 : f32 to vector<2x256xf32>
    %105 = arith.addf %104, %103 : vector<2x256xf32>
    %106 = arith.divf %104, %105 : vector<2x256xf32>
    %107 = arith.mulf %101, %106 : vector<2x256xf32>
    %108 = vector.extract_strided_slice %0 {offsets = [6, 0], sizes = [2, 256], strides = [1, 1]} : vector<8x256xf32> to vector<2x256xf32>
    %cst_27 = arith.constant dense<0.000000e+00> : vector<2xf32>
    %109 = vector.multi_reduction <add>, %108, %cst_27 [1] : vector<2x256xf32> to vector<2xf32>
    %110 = vector.shape_cast %109 : vector<2xf32> to vector<2x1xf32>
    %111 = arith.mulf %108, %108 : vector<2x256xf32>
    %cst_28 = arith.constant dense<0.000000e+00> : vector<2xf32>
    %112 = vector.multi_reduction <add>, %111, %cst_28 [1] : vector<2x256xf32> to vector<2xf32>
    %113 = vector.shape_cast %112 : vector<2xf32> to vector<2x1xf32>
    %cst_29 = arith.constant dense<0.000000e+00> : vector<1xf32>
    %114 = vector.multi_reduction <add>, %110, %cst_29 [0] : vector<2x1xf32> to vector<1xf32>
    %115 = vector.shape_cast %114 : vector<1xf32> to vector<1x1xf32>
    %cst_30 = arith.constant 0.001953125 : f32
    %116 = vector.broadcast %cst_30 : f32 to vector<1x1xf32>
    %117 = arith.mulf %115, %116 : vector<1x1xf32>
    %cst_31 = arith.constant dense<0.000000e+00> : vector<1xf32>
    %118 = vector.multi_reduction <add>, %113, %cst_31 [0] : vector<2x1xf32> to vector<1xf32>
    %119 = vector.shape_cast %118 : vector<1xf32> to vector<1x1xf32>
    %cst_32 = arith.constant 0.001953125 : f32
    %120 = vector.broadcast %cst_32 : f32 to vector<1x1xf32>
    %121 = arith.mulf %119, %120 : vector<1x1xf32>
    %122 = arith.mulf %117, %117 : vector<1x1xf32>
    %123 = arith.subf %121, %122 : vector<1x1xf32>
    %cst_33 = arith.constant 9.99999997E-7 : f32
    %124 = vector.broadcast %cst_33 : f32 to vector<1x1xf32>
    %125 = arith.addf %123, %124 : vector<1x1xf32>
    %126 = math.rsqrt %125 : vector<1x1xf32>
    %127 = vector.extract_strided_slice %1 {offsets = [6, 0], sizes = [2, 1], strides = [1, 1]} : vector<8x1xf32> to vector<2x1xf32>
    %128 = vector.extract_strided_slice %2 {offsets = [6, 0], sizes = [2, 1], strides = [1, 1]} : vector<8x1xf32> to vector<2x1xf32>
    %129 = vector.broadcast %117 : vector<1x1xf32> to vector<2x256xf32>
    %130 = arith.subf %108, %129 : vector<2x256xf32>
    %131 = vector.broadcast %126 : vector<1x1xf32> to vector<2x1xf32>
    %132 = arith.mulf %131, %127 : vector<2x1xf32>
    %133 = vector.broadcast %132 : vector<2x1xf32> to vector<2x256xf32>
    %134 = arith.mulf %130, %133 : vector<2x256xf32>
    %135 = vector.broadcast %128 : vector<2x1xf32> to vector<2x256xf32>
    %136 = arith.addf %134, %135 : vector<2x256xf32>
    %137 = arith.negf %136 : vector<2x256xf32>
    %138 = math.exp %137 : vector<2x256xf32>
    %cst_34 = arith.constant 1.000000e+00 : f32
    %139 = vector.broadcast %cst_34 : f32 to vector<2x256xf32>
    %140 = arith.addf %139, %138 : vector<2x256xf32>
    %141 = arith.divf %139, %140 : vector<2x256xf32>
    %142 = arith.mulf %136, %141 : vector<2x256xf32>
    %143 = tpu.concatenate %37, %72, %107, %142 in 0 : vector<2x256xf32>, vector<2x256xf32>, vector<2x256xf32>, vector<2x256xf32> -> vector<8x256xf32>
    %c17_i32 = arith.constant 17 : i32
    %144 = tpu.dynamic_rotate %143 by %c17_i32 dim 1 : vector<8x256xf32>, i32 -> vector<8x256xf32>
    %c0_35 = arith.constant 0 : index
    %c0_36 = arith.constant 0 : index
    %c0_37 = arith.constant 0 : index
    %145 = vector.load %arg3[%c0_35, %c0_36, %c0_37] : memref<9x1x256xf32, #tpu.memory_space<vmem>>, vector<1x1x256xf32>
    %146 = vector.shape_cast %145 : vector<1x1x256xf32> to vector<1x256xf32>
    %147 = vector.broadcast %146 : vector<1x256xf32> to vector<8x256xf32>
    %148 = arith.mulf %144, %147 : vector<8x256xf32>
    %149 = arith.truncf %148 : vector<8x256xf32> to vector<8x256xbf16>
    %c16_i32 = arith.constant 16 : i32
    %150 = tpu.dynamic_rotate %143 by %c16_i32 dim 1 : vector<8x256xf32>, i32 -> vector<8x256xf32>
    %c1_38 = arith.constant 1 : index
    %c0_39 = arith.constant 0 : index
    %c0_40 = arith.constant 0 : index
    %151 = vector.load %arg3[%c1_38, %c0_39, %c0_40] : memref<9x1x256xf32, #tpu.memory_space<vmem>>, vector<1x1x256xf32>
    %152 = vector.shape_cast %151 : vector<1x1x256xf32> to vector<1x256xf32>
    %153 = vector.broadcast %152 : vector<1x256xf32> to vector<8x256xf32>
    %154 = arith.mulf %150, %153 : vector<8x256xf32>
    %155 = arith.truncf %154 : vector<8x256xf32> to vector<8x256xbf16>
    %c15_i32 = arith.constant 15 : i32
    %156 = tpu.dynamic_rotate %143 by %c15_i32 dim 1 : vector<8x256xf32>, i32 -> vector<8x256xf32>
    %c2 = arith.constant 2 : index
    %c0_41 = arith.constant 0 : index
    %c0_42 = arith.constant 0 : index
    %157 = vector.load %arg3[%c2, %c0_41, %c0_42] : memref<9x1x256xf32, #tpu.memory_space<vmem>>, vector<1x1x256xf32>
    %158 = vector.shape_cast %157 : vector<1x1x256xf32> to vector<1x256xf32>
    %159 = vector.broadcast %158 : vector<1x256xf32> to vector<8x256xf32>
    %160 = arith.mulf %156, %159 : vector<8x256xf32>
    %161 = arith.truncf %160 : vector<8x256xf32> to vector<8x256xbf16>
    %c1_i32 = arith.constant 1 : i32
    %162 = tpu.dynamic_rotate %143 by %c1_i32 dim 1 : vector<8x256xf32>, i32 -> vector<8x256xf32>
    %c3 = arith.constant 3 : index
    %c0_43 = arith.constant 0 : index
    %c0_44 = arith.constant 0 : index
    %163 = vector.load %arg3[%c3, %c0_43, %c0_44] : memref<9x1x256xf32, #tpu.memory_space<vmem>>, vector<1x1x256xf32>
    %164 = vector.shape_cast %163 : vector<1x1x256xf32> to vector<1x256xf32>
    %165 = vector.broadcast %164 : vector<1x256xf32> to vector<8x256xf32>
    %166 = arith.mulf %162, %165 : vector<8x256xf32>
    %167 = arith.truncf %166 : vector<8x256xf32> to vector<8x256xbf16>
    %168 = arith.truncf %143 : vector<8x256xf32> to vector<8x256xbf16>
    %c255_i32 = arith.constant 255 : i32
    %169 = tpu.dynamic_rotate %143 by %c255_i32 dim 1 : vector<8x256xf32>, i32 -> vector<8x256xf32>
    %c5 = arith.constant 5 : index
    %c0_45 = arith.constant 0 : index
    %c0_46 = arith.constant 0 : index
    %170 = vector.load %arg3[%c5, %c0_45, %c0_46] : memref<9x1x256xf32, #tpu.memory_space<vmem>>, vector<1x1x256xf32>
    %171 = vector.shape_cast %170 : vector<1x1x256xf32> to vector<1x256xf32>
    %172 = vector.broadcast %171 : vector<1x256xf32> to vector<8x256xf32>
    %173 = arith.mulf %169, %172 : vector<8x256xf32>
    %174 = arith.truncf %173 : vector<8x256xf32> to vector<8x256xbf16>
    %c241_i32 = arith.constant 241 : i32
    %175 = tpu.dynamic_rotate %143 by %c241_i32 dim 1 : vector<8x256xf32>, i32 -> vector<8x256xf32>
    %c6 = arith.constant 6 : index
    %c0_47 = arith.constant 0 : index
    %c0_48 = arith.constant 0 : index
    %176 = vector.load %arg3[%c6, %c0_47, %c0_48] : memref<9x1x256xf32, #tpu.memory_space<vmem>>, vector<1x1x256xf32>
    %177 = vector.shape_cast %176 : vector<1x1x256xf32> to vector<1x256xf32>
    %178 = vector.broadcast %177 : vector<1x256xf32> to vector<8x256xf32>
    %179 = arith.mulf %175, %178 : vector<8x256xf32>
    %180 = arith.truncf %179 : vector<8x256xf32> to vector<8x256xbf16>
    %c240_i32 = arith.constant 240 : i32
    %181 = tpu.dynamic_rotate %143 by %c240_i32 dim 1 : vector<8x256xf32>, i32 -> vector<8x256xf32>
    %c7 = arith.constant 7 : index
    %c0_49 = arith.constant 0 : index
    %c0_50 = arith.constant 0 : index
    %182 = vector.load %arg3[%c7, %c0_49, %c0_50] : memref<9x1x256xf32, #tpu.memory_space<vmem>>, vector<1x1x256xf32>
    %183 = vector.shape_cast %182 : vector<1x1x256xf32> to vector<1x256xf32>
    %184 = vector.broadcast %183 : vector<1x256xf32> to vector<8x256xf32>
    %185 = arith.mulf %181, %184 : vector<8x256xf32>
    %186 = arith.truncf %185 : vector<8x256xf32> to vector<8x256xbf16>
    %c239_i32 = arith.constant 239 : i32
    %187 = tpu.dynamic_rotate %143 by %c239_i32 dim 1 : vector<8x256xf32>, i32 -> vector<8x256xf32>
    %c8 = arith.constant 8 : index
    %c0_51 = arith.constant 0 : index
    %c0_52 = arith.constant 0 : index
    %188 = vector.load %arg3[%c8, %c0_51, %c0_52] : memref<9x1x256xf32, #tpu.memory_space<vmem>>, vector<1x1x256xf32>
    %189 = vector.shape_cast %188 : vector<1x1x256xf32> to vector<1x256xf32>
    %190 = vector.broadcast %189 : vector<1x256xf32> to vector<8x256xf32>
    %191 = arith.mulf %187, %190 : vector<8x256xf32>
    %192 = arith.truncf %191 : vector<8x256xf32> to vector<8x256xbf16>
    %193 = tpu.concatenate %149, %155, %161, %167, %168, %174, %180, %186, %192 in 0 : vector<8x256xbf16>, vector<8x256xbf16>, vector<8x256xbf16>, vector<8x256xbf16>, vector<8x256xbf16>, vector<8x256xbf16>, vector<8x256xbf16>, vector<8x256xbf16>, vector<8x256xbf16> -> vector<72x256xbf16>
    %c0_53 = arith.constant 0 : index
    %c0_54 = arith.constant 0 : index
    %194 = vector.load %arg5[%c0_53, %c0_54] : memref<16x72xbf16, #tpu.memory_space<vmem>>, vector<16x72xbf16>
    %cst_55 = arith.constant dense<0.000000e+00> : vector<16x256xf32>
    %195 = tpu.matmul %194, %193, %cst_55 {dimension_numbers = #tpu.dot_dimension_numbers<[1], [0], [0], [1], [0, 0, 1, 1], [], []>} : vector<16x72xbf16>, vector<72x256xbf16>, vector<16x256xf32> -> vector<16x256xf32>
    %c0_56 = arith.constant 0 : index
    %c0_57 = arith.constant 0 : index
    %196 = vector.load %arg6[%c0_56, %c0_57] : memref<16x3xf32, #tpu.memory_space<vmem>>, vector<16x1xf32>
    %c0_58 = arith.constant 0 : index
    %c1_59 = arith.constant 1 : index
    %197 = vector.load %arg6[%c0_58, %c1_59] : memref<16x3xf32, #tpu.memory_space<vmem>>, vector<16x1xf32>
    %c0_60 = arith.constant 0 : index
    %c0_61 = arith.constant 0 : index
    %c0_62 = arith.constant 0 : index
    %198 = vector.load %arg2[%c0_60, %c0_61, %c0_62] : memref<1x16x1xf32, #tpu.memory_space<vmem>>, vector<1x16x1xf32>
    %199 = vector.shape_cast %198 : vector<1x16x1xf32> to vector<16x1xf32>
    %200 = vector.broadcast %199 : vector<16x1xf32> to vector<16x256xf32>
    %201 = arith.addf %195, %200 : vector<16x256xf32>
    %202 = vector.extract_strided_slice %201 {offsets = [0, 0], sizes = [4, 256], strides = [1, 1]} : vector<16x256xf32> to vector<4x256xf32>
    %cst_63 = arith.constant dense<0.000000e+00> : vector<4xf32>
    %203 = vector.multi_reduction <add>, %202, %cst_63 [1] : vector<4x256xf32> to vector<4xf32>
    %204 = vector.shape_cast %203 : vector<4xf32> to vector<4x1xf32>
    %205 = arith.mulf %202, %202 : vector<4x256xf32>
    %cst_64 = arith.constant dense<0.000000e+00> : vector<4xf32>
    %206 = vector.multi_reduction <add>, %205, %cst_64 [1] : vector<4x256xf32> to vector<4xf32>
    %207 = vector.shape_cast %206 : vector<4xf32> to vector<4x1xf32>
    %cst_65 = arith.constant dense<0.000000e+00> : vector<1xf32>
    %208 = vector.multi_reduction <add>, %204, %cst_65 [0] : vector<4x1xf32> to vector<1xf32>
    %209 = vector.shape_cast %208 : vector<1xf32> to vector<1x1xf32>
    %cst_66 = arith.constant 9.765625E-4 : f32
    %210 = vector.broadcast %cst_66 : f32 to vector<1x1xf32>
    %211 = arith.mulf %209, %210 : vector<1x1xf32>
    %cst_67 = arith.constant dense<0.000000e+00> : vector<1xf32>
    %212 = vector.multi_reduction <add>, %207, %cst_67 [0] : vector<4x1xf32> to vector<1xf32>
    %213 = vector.shape_cast %212 : vector<1xf32> to vector<1x1xf32>
    %cst_68 = arith.constant 9.765625E-4 : f32
    %214 = vector.broadcast %cst_68 : f32 to vector<1x1xf32>
    %215 = arith.mulf %213, %214 : vector<1x1xf32>
    %216 = arith.mulf %211, %211 : vector<1x1xf32>
    %217 = arith.subf %215, %216 : vector<1x1xf32>
    %cst_69 = arith.constant 9.99999997E-7 : f32
    %218 = vector.broadcast %cst_69 : f32 to vector<1x1xf32>
    %219 = arith.addf %217, %218 : vector<1x1xf32>
    %220 = math.rsqrt %219 : vector<1x1xf32>
    %221 = vector.extract_strided_slice %196 {offsets = [0, 0], sizes = [4, 1], strides = [1, 1]} : vector<16x1xf32> to vector<4x1xf32>
    %222 = vector.extract_strided_slice %197 {offsets = [0, 0], sizes = [4, 1], strides = [1, 1]} : vector<16x1xf32> to vector<4x1xf32>
    %223 = vector.broadcast %211 : vector<1x1xf32> to vector<4x256xf32>
    %224 = arith.subf %202, %223 : vector<4x256xf32>
    %225 = vector.broadcast %220 : vector<1x1xf32> to vector<4x1xf32>
    %226 = arith.mulf %225, %221 : vector<4x1xf32>
    %227 = vector.broadcast %226 : vector<4x1xf32> to vector<4x256xf32>
    %228 = arith.mulf %224, %227 : vector<4x256xf32>
    %229 = vector.broadcast %222 : vector<4x1xf32> to vector<4x256xf32>
    %230 = arith.addf %228, %229 : vector<4x256xf32>
    %231 = arith.negf %230 : vector<4x256xf32>
    %232 = math.exp %231 : vector<4x256xf32>
    %cst_70 = arith.constant 1.000000e+00 : f32
    %233 = vector.broadcast %cst_70 : f32 to vector<4x256xf32>
    %234 = arith.addf %233, %232 : vector<4x256xf32>
    %235 = arith.divf %233, %234 : vector<4x256xf32>
    %236 = arith.mulf %230, %235 : vector<4x256xf32>
    %237 = vector.extract_strided_slice %201 {offsets = [4, 0], sizes = [4, 256], strides = [1, 1]} : vector<16x256xf32> to vector<4x256xf32>
    %cst_71 = arith.constant dense<0.000000e+00> : vector<4xf32>
    %238 = vector.multi_reduction <add>, %237, %cst_71 [1] : vector<4x256xf32> to vector<4xf32>
    %239 = vector.shape_cast %238 : vector<4xf32> to vector<4x1xf32>
    %240 = arith.mulf %237, %237 : vector<4x256xf32>
    %cst_72 = arith.constant dense<0.000000e+00> : vector<4xf32>
    %241 = vector.multi_reduction <add>, %240, %cst_72 [1] : vector<4x256xf32> to vector<4xf32>
    %242 = vector.shape_cast %241 : vector<4xf32> to vector<4x1xf32>
    %cst_73 = arith.constant dense<0.000000e+00> : vector<1xf32>
    %243 = vector.multi_reduction <add>, %239, %cst_73 [0] : vector<4x1xf32> to vector<1xf32>
    %244 = vector.shape_cast %243 : vector<1xf32> to vector<1x1xf32>
    %cst_74 = arith.constant 9.765625E-4 : f32
    %245 = vector.broadcast %cst_74 : f32 to vector<1x1xf32>
    %246 = arith.mulf %244, %245 : vector<1x1xf32>
    %cst_75 = arith.constant dense<0.000000e+00> : vector<1xf32>
    %247 = vector.multi_reduction <add>, %242, %cst_75 [0] : vector<4x1xf32> to vector<1xf32>
    %248 = vector.shape_cast %247 : vector<1xf32> to vector<1x1xf32>
    %cst_76 = arith.constant 9.765625E-4 : f32
    %249 = vector.broadcast %cst_76 : f32 to vector<1x1xf32>
    %250 = arith.mulf %248, %249 : vector<1x1xf32>
    %251 = arith.mulf %246, %246 : vector<1x1xf32>
    %252 = arith.subf %250, %251 : vector<1x1xf32>
    %cst_77 = arith.constant 9.99999997E-7 : f32
    %253 = vector.broadcast %cst_77 : f32 to vector<1x1xf32>
    %254 = arith.addf %252, %253 : vector<1x1xf32>
    %255 = math.rsqrt %254 : vector<1x1xf32>
    %256 = vector.extract_strided_slice %196 {offsets = [4, 0], sizes = [4, 1], strides = [1, 1]} : vector<16x1xf32> to vector<4x1xf32>
    %257 = vector.extract_strided_slice %197 {offsets = [4, 0], sizes = [4, 1], strides = [1, 1]} : vector<16x1xf32> to vector<4x1xf32>
    %258 = vector.broadcast %246 : vector<1x1xf32> to vector<4x256xf32>
    %259 = arith.subf %237, %258 : vector<4x256xf32>
    %260 = vector.broadcast %255 : vector<1x1xf32> to vector<4x1xf32>
    %261 = arith.mulf %260, %256 : vector<4x1xf32>
    %262 = vector.broadcast %261 : vector<4x1xf32> to vector<4x256xf32>
    %263 = arith.mulf %259, %262 : vector<4x256xf32>
    %264 = vector.broadcast %257 : vector<4x1xf32> to vector<4x256xf32>
    %265 = arith.addf %263, %264 : vector<4x256xf32>
    %266 = arith.negf %265 : vector<4x256xf32>
    %267 = math.exp %266 : vector<4x256xf32>
    %cst_78 = arith.constant 1.000000e+00 : f32
    %268 = vector.broadcast %cst_78 : f32 to vector<4x256xf32>
    %269 = arith.addf %268, %267 : vector<4x256xf32>
    %270 = arith.divf %268, %269 : vector<4x256xf32>
    %271 = arith.mulf %265, %270 : vector<4x256xf32>
    %272 = vector.extract_strided_slice %201 {offsets = [8, 0], sizes = [4, 256], strides = [1, 1]} : vector<16x256xf32> to vector<4x256xf32>
    %cst_79 = arith.constant dense<0.000000e+00> : vector<4xf32>
    %273 = vector.multi_reduction <add>, %272, %cst_79 [1] : vector<4x256xf32> to vector<4xf32>
    %274 = vector.shape_cast %273 : vector<4xf32> to vector<4x1xf32>
    %275 = arith.mulf %272, %272 : vector<4x256xf32>
    %cst_80 = arith.constant dense<0.000000e+00> : vector<4xf32>
    %276 = vector.multi_reduction <add>, %275, %cst_80 [1] : vector<4x256xf32> to vector<4xf32>
    %277 = vector.shape_cast %276 : vector<4xf32> to vector<4x1xf32>
    %cst_81 = arith.constant dense<0.000000e+00> : vector<1xf32>
    %278 = vector.multi_reduction <add>, %274, %cst_81 [0] : vector<4x1xf32> to vector<1xf32>
    %279 = vector.shape_cast %278 : vector<1xf32> to vector<1x1xf32>
    %cst_82 = arith.constant 9.765625E-4 : f32
    %280 = vector.broadcast %cst_82 : f32 to vector<1x1xf32>
    %281 = arith.mulf %279, %280 : vector<1x1xf32>
    %cst_83 = arith.constant dense<0.000000e+00> : vector<1xf32>
    %282 = vector.multi_reduction <add>, %277, %cst_83 [0] : vector<4x1xf32> to vector<1xf32>
    %283 = vector.shape_cast %282 : vector<1xf32> to vector<1x1xf32>
    %cst_84 = arith.constant 9.765625E-4 : f32
    %284 = vector.broadcast %cst_84 : f32 to vector<1x1xf32>
    %285 = arith.mulf %283, %284 : vector<1x1xf32>
    %286 = arith.mulf %281, %281 : vector<1x1xf32>
    %287 = arith.subf %285, %286 : vector<1x1xf32>
    %cst_85 = arith.constant 9.99999997E-7 : f32
    %288 = vector.broadcast %cst_85 : f32 to vector<1x1xf32>
    %289 = arith.addf %287, %288 : vector<1x1xf32>
    %290 = math.rsqrt %289 : vector<1x1xf32>
    %291 = vector.extract_strided_slice %196 {offsets = [8, 0], sizes = [4, 1], strides = [1, 1]} : vector<16x1xf32> to vector<4x1xf32>
    %292 = vector.extract_strided_slice %197 {offsets = [8, 0], sizes = [4, 1], strides = [1, 1]} : vector<16x1xf32> to vector<4x1xf32>
    %293 = vector.broadcast %281 : vector<1x1xf32> to vector<4x256xf32>
    %294 = arith.subf %272, %293 : vector<4x256xf32>
    %295 = vector.broadcast %290 : vector<1x1xf32> to vector<4x1xf32>
    %296 = arith.mulf %295, %291 : vector<4x1xf32>
    %297 = vector.broadcast %296 : vector<4x1xf32> to vector<4x256xf32>
    %298 = arith.mulf %294, %297 : vector<4x256xf32>
    %299 = vector.broadcast %292 : vector<4x1xf32> to vector<4x256xf32>
    %300 = arith.addf %298, %299 : vector<4x256xf32>
    %301 = arith.negf %300 : vector<4x256xf32>
    %302 = math.exp %301 : vector<4x256xf32>
    %cst_86 = arith.constant 1.000000e+00 : f32
    %303 = vector.broadcast %cst_86 : f32 to vector<4x256xf32>
    %304 = arith.addf %303, %302 : vector<4x256xf32>
    %305 = arith.divf %303, %304 : vector<4x256xf32>
    %306 = arith.mulf %300, %305 : vector<4x256xf32>
    %307 = vector.extract_strided_slice %201 {offsets = [12, 0], sizes = [4, 256], strides = [1, 1]} : vector<16x256xf32> to vector<4x256xf32>
    %cst_87 = arith.constant dense<0.000000e+00> : vector<4xf32>
    %308 = vector.multi_reduction <add>, %307, %cst_87 [1] : vector<4x256xf32> to vector<4xf32>
    %309 = vector.shape_cast %308 : vector<4xf32> to vector<4x1xf32>
    %310 = arith.mulf %307, %307 : vector<4x256xf32>
    %cst_88 = arith.constant dense<0.000000e+00> : vector<4xf32>
    %311 = vector.multi_reduction <add>, %310, %cst_88 [1] : vector<4x256xf32> to vector<4xf32>
    %312 = vector.shape_cast %311 : vector<4xf32> to vector<4x1xf32>
    %cst_89 = arith.constant dense<0.000000e+00> : vector<1xf32>
    %313 = vector.multi_reduction <add>, %309, %cst_89 [0] : vector<4x1xf32> to vector<1xf32>
    %314 = vector.shape_cast %313 : vector<1xf32> to vector<1x1xf32>
    %cst_90 = arith.constant 9.765625E-4 : f32
    %315 = vector.broadcast %cst_90 : f32 to vector<1x1xf32>
    %316 = arith.mulf %314, %315 : vector<1x1xf32>
    %cst_91 = arith.constant dense<0.000000e+00> : vector<1xf32>
    %317 = vector.multi_reduction <add>, %312, %cst_91 [0] : vector<4x1xf32> to vector<1xf32>
    %318 = vector.shape_cast %317 : vector<1xf32> to vector<1x1xf32>
    %cst_92 = arith.constant 9.765625E-4 : f32
    %319 = vector.broadcast %cst_92 : f32 to vector<1x1xf32>
    %320 = arith.mulf %318, %319 : vector<1x1xf32>
    %321 = arith.mulf %316, %316 : vector<1x1xf32>
    %322 = arith.subf %320, %321 : vector<1x1xf32>
    %cst_93 = arith.constant 9.99999997E-7 : f32
    %323 = vector.broadcast %cst_93 : f32 to vector<1x1xf32>
    %324 = arith.addf %322, %323 : vector<1x1xf32>
    %325 = math.rsqrt %324 : vector<1x1xf32>
    %326 = vector.extract_strided_slice %196 {offsets = [12, 0], sizes = [4, 1], strides = [1, 1]} : vector<16x1xf32> to vector<4x1xf32>
    %327 = vector.extract_strided_slice %197 {offsets = [12, 0], sizes = [4, 1], strides = [1, 1]} : vector<16x1xf32> to vector<4x1xf32>
    %328 = vector.broadcast %316 : vector<1x1xf32> to vector<4x256xf32>
    %329 = arith.subf %307, %328 : vector<4x256xf32>
    %330 = vector.broadcast %325 : vector<1x1xf32> to vector<4x1xf32>
    %331 = arith.mulf %330, %326 : vector<4x1xf32>
    %332 = vector.broadcast %331 : vector<4x1xf32> to vector<4x256xf32>
    %333 = arith.mulf %329, %332 : vector<4x256xf32>
    %334 = vector.broadcast %327 : vector<4x1xf32> to vector<4x256xf32>
    %335 = arith.addf %333, %334 : vector<4x256xf32>
    %336 = arith.negf %335 : vector<4x256xf32>
    %337 = math.exp %336 : vector<4x256xf32>
    %cst_94 = arith.constant 1.000000e+00 : f32
    %338 = vector.broadcast %cst_94 : f32 to vector<4x256xf32>
    %339 = arith.addf %338, %337 : vector<4x256xf32>
    %340 = arith.divf %338, %339 : vector<4x256xf32>
    %341 = arith.mulf %335, %340 : vector<4x256xf32>
    %342 = tpu.concatenate %236, %271, %306, %341 in 0 : vector<4x256xf32>, vector<4x256xf32>, vector<4x256xf32>, vector<4x256xf32> -> vector<16x256xf32>
    %c17_i32_95 = arith.constant 17 : i32
    %343 = tpu.dynamic_rotate %342 by %c17_i32_95 dim 1 : vector<16x256xf32>, i32 -> vector<16x256xf32>
    %c0_96 = arith.constant 0 : index
    %c0_97 = arith.constant 0 : index
    %c0_98 = arith.constant 0 : index
    %344 = vector.load %arg3[%c0_96, %c0_97, %c0_98] : memref<9x1x256xf32, #tpu.memory_space<vmem>>, vector<1x1x256xf32>
    %345 = vector.shape_cast %344 : vector<1x1x256xf32> to vector<1x256xf32>
    %346 = vector.broadcast %345 : vector<1x256xf32> to vector<16x256xf32>
    %347 = arith.mulf %343, %346 : vector<16x256xf32>
    %348 = arith.truncf %347 : vector<16x256xf32> to vector<16x256xbf16>
    %c16_i32_99 = arith.constant 16 : i32
    %349 = tpu.dynamic_rotate %342 by %c16_i32_99 dim 1 : vector<16x256xf32>, i32 -> vector<16x256xf32>
    %c1_100 = arith.constant 1 : index
    %c0_101 = arith.constant 0 : index
    %c0_102 = arith.constant 0 : index
    %350 = vector.load %arg3[%c1_100, %c0_101, %c0_102] : memref<9x1x256xf32, #tpu.memory_space<vmem>>, vector<1x1x256xf32>
    %351 = vector.shape_cast %350 : vector<1x1x256xf32> to vector<1x256xf32>
    %352 = vector.broadcast %351 : vector<1x256xf32> to vector<16x256xf32>
    %353 = arith.mulf %349, %352 : vector<16x256xf32>
    %354 = arith.truncf %353 : vector<16x256xf32> to vector<16x256xbf16>
    %c15_i32_103 = arith.constant 15 : i32
    %355 = tpu.dynamic_rotate %342 by %c15_i32_103 dim 1 : vector<16x256xf32>, i32 -> vector<16x256xf32>
    %c2_104 = arith.constant 2 : index
    %c0_105 = arith.constant 0 : index
    %c0_106 = arith.constant 0 : index
    %356 = vector.load %arg3[%c2_104, %c0_105, %c0_106] : memref<9x1x256xf32, #tpu.memory_space<vmem>>, vector<1x1x256xf32>
    %357 = vector.shape_cast %356 : vector<1x1x256xf32> to vector<1x256xf32>
    %358 = vector.broadcast %357 : vector<1x256xf32> to vector<16x256xf32>
    %359 = arith.mulf %355, %358 : vector<16x256xf32>
    %360 = arith.truncf %359 : vector<16x256xf32> to vector<16x256xbf16>
    %c1_i32_107 = arith.constant 1 : i32
    %361 = tpu.dynamic_rotate %342 by %c1_i32_107 dim 1 : vector<16x256xf32>, i32 -> vector<16x256xf32>
    %c3_108 = arith.constant 3 : index
    %c0_109 = arith.constant 0 : index
    %c0_110 = arith.constant 0 : index
    %362 = vector.load %arg3[%c3_108, %c0_109, %c0_110] : memref<9x1x256xf32, #tpu.memory_space<vmem>>, vector<1x1x256xf32>
    %363 = vector.shape_cast %362 : vector<1x1x256xf32> to vector<1x256xf32>
    %364 = vector.broadcast %363 : vector<1x256xf32> to vector<16x256xf32>
    %365 = arith.mulf %361, %364 : vector<16x256xf32>
    %366 = arith.truncf %365 : vector<16x256xf32> to vector<16x256xbf16>
    %367 = arith.truncf %342 : vector<16x256xf32> to vector<16x256xbf16>
    %c255_i32_111 = arith.constant 255 : i32
    %368 = tpu.dynamic_rotate %342 by %c255_i32_111 dim 1 : vector<16x256xf32>, i32 -> vector<16x256xf32>
    %c5_112 = arith.constant 5 : index
    %c0_113 = arith.constant 0 : index
    %c0_114 = arith.constant 0 : index
    %369 = vector.load %arg3[%c5_112, %c0_113, %c0_114] : memref<9x1x256xf32, #tpu.memory_space<vmem>>, vector<1x1x256xf32>
    %370 = vector.shape_cast %369 : vector<1x1x256xf32> to vector<1x256xf32>
    %371 = vector.broadcast %370 : vector<1x256xf32> to vector<16x256xf32>
    %372 = arith.mulf %368, %371 : vector<16x256xf32>
    %373 = arith.truncf %372 : vector<16x256xf32> to vector<16x256xbf16>
    %c241_i32_115 = arith.constant 241 : i32
    %374 = tpu.dynamic_rotate %342 by %c241_i32_115 dim 1 : vector<16x256xf32>, i32 -> vector<16x256xf32>
    %c6_116 = arith.constant 6 : index
    %c0_117 = arith.constant 0 : index
    %c0_118 = arith.constant 0 : index
    %375 = vector.load %arg3[%c6_116, %c0_117, %c0_118] : memref<9x1x256xf32, #tpu.memory_space<vmem>>, vector<1x1x256xf32>
    %376 = vector.shape_cast %375 : vector<1x1x256xf32> to vector<1x256xf32>
    %377 = vector.broadcast %376 : vector<1x256xf32> to vector<16x256xf32>
    %378 = arith.mulf %374, %377 : vector<16x256xf32>
    %379 = arith.truncf %378 : vector<16x256xf32> to vector<16x256xbf16>
    %c240_i32_119 = arith.constant 240 : i32
    %380 = tpu.dynamic_rotate %342 by %c240_i32_119 dim 1 : vector<16x256xf32>, i32 -> vector<16x256xf32>
    %c7_120 = arith.constant 7 : index
    %c0_121 = arith.constant 0 : index
    %c0_122 = arith.constant 0 : index
    %381 = vector.load %arg3[%c7_120, %c0_121, %c0_122] : memref<9x1x256xf32, #tpu.memory_space<vmem>>, vector<1x1x256xf32>
    %382 = vector.shape_cast %381 : vector<1x1x256xf32> to vector<1x256xf32>
    %383 = vector.broadcast %382 : vector<1x256xf32> to vector<16x256xf32>
    %384 = arith.mulf %380, %383 : vector<16x256xf32>
    %385 = arith.truncf %384 : vector<16x256xf32> to vector<16x256xbf16>
    %c239_i32_123 = arith.constant 239 : i32
    %386 = tpu.dynamic_rotate %342 by %c239_i32_123 dim 1 : vector<16x256xf32>, i32 -> vector<16x256xf32>
    %c8_124 = arith.constant 8 : index
    %c0_125 = arith.constant 0 : index
    %c0_126 = arith.constant 0 : index
    %387 = vector.load %arg3[%c8_124, %c0_125, %c0_126] : memref<9x1x256xf32, #tpu.memory_space<vmem>>, vector<1x1x256xf32>
    %388 = vector.shape_cast %387 : vector<1x1x256xf32> to vector<1x256xf32>
    %389 = vector.broadcast %388 : vector<1x256xf32> to vector<16x256xf32>
    %390 = arith.mulf %386, %389 : vector<16x256xf32>
    %391 = arith.truncf %390 : vector<16x256xf32> to vector<16x256xbf16>
    %392 = tpu.concatenate %348, %354, %360, %366, %367, %373, %379, %385, %391 in 0 : vector<16x256xbf16>, vector<16x256xbf16>, vector<16x256xbf16>, vector<16x256xbf16>, vector<16x256xbf16>, vector<16x256xbf16>, vector<16x256xbf16>, vector<16x256xbf16>, vector<16x256xbf16> -> vector<144x256xbf16>
    %c0_127 = arith.constant 0 : index
    %c0_128 = arith.constant 0 : index
    %393 = vector.load %arg7[%c0_127, %c0_128] : memref<16x144xbf16, #tpu.memory_space<vmem>>, vector<16x144xbf16>
    %cst_129 = arith.constant dense<0.000000e+00> : vector<16x256xf32>
    %394 = tpu.matmul %393, %392, %cst_129 {dimension_numbers = #tpu.dot_dimension_numbers<[1], [0], [0], [1], [0, 0, 1, 1], [], []>} : vector<16x144xbf16>, vector<144x256xbf16>, vector<16x256xf32> -> vector<16x256xf32>
    %c0_130 = arith.constant 0 : index
    %c0_131 = arith.constant 0 : index
    %395 = vector.load %arg8[%c0_130, %c0_131] : memref<16x8xbf16, #tpu.memory_space<vmem>>, vector<16x8xbf16>
    %396 = arith.truncf %0 : vector<8x256xf32> to vector<8x256xbf16>
    %cst_132 = arith.constant dense<0.000000e+00> : vector<16x256xf32>
    %397 = tpu.matmul %395, %396, %cst_132 {dimension_numbers = #tpu.dot_dimension_numbers<[1], [0], [0], [1], [0, 0, 1, 1], [], []>} : vector<16x8xbf16>, vector<8x256xbf16>, vector<16x256xf32> -> vector<16x256xf32>
    %398 = arith.addf %394, %397 : vector<16x256xf32>
    %c0_133 = arith.constant 0 : index
    %c2_134 = arith.constant 2 : index
    %399 = vector.load %arg6[%c0_133, %c2_134] : memref<16x3xf32, #tpu.memory_space<vmem>>, vector<16x1xf32>
    %400 = vector.broadcast %399 : vector<16x1xf32> to vector<16x256xf32>
    %401 = arith.addf %398, %400 : vector<16x256xf32>
    %c0_135 = arith.constant 0 : index
    %c0_136 = arith.constant 0 : index
    %402 = vector.load %arg9[%c0_135, %c0_136] : memref<16x256xf32, #tpu.memory_space<vmem>>, vector<16x256xf32>
    tpu.vector_store %arg9[%c0_135, %c0_136], %401 {strides = array<i32>} : memref<16x256xf32, #tpu.memory_space<vmem>>, vector<16x256xf32>,
    return
  }
  func.func @transform_0(%arg0: i32) -> (i32, i32) {
    %c0_i32 = arith.constant 0 : i32
    %c0_i32_0 = arith.constant 0 : i32
    return %c0_i32, %arg0 : i32, i32
  }
  func.func @transform_1(%arg0: i32) -> (i32, i32, i32) {
    %c0_i32 = arith.constant 0 : i32
    %c0_i32_0 = arith.constant 0 : i32
    %c0_i32_1 = arith.constant 0 : i32
    return %arg0, %c0_i32, %c0_i32_0 : i32, i32, i32
  }
  func.func @transform_2(%arg0: i32) -> (i32, i32, i32) {
    %c0_i32 = arith.constant 0 : i32
    %c0_i32_0 = arith.constant 0 : i32
    %c0_i32_1 = arith.constant 0 : i32
    %c0_i32_2 = arith.constant 0 : i32
    return %c0_i32, %c0_i32_0, %c0_i32_1 : i32, i32, i32
  }
  func.func @transform_3(%arg0: i32) -> (i32, i32) {
    %c0_i32 = arith.constant 0 : i32
    %c0_i32_0 = arith.constant 0 : i32
    %c0_i32_1 = arith.constant 0 : i32
    return %c0_i32, %c0_i32_0 : i32, i32
  }
  func.func @transform_4(%arg0: i32) -> (i32, i32) {
    %c0_i32 = arith.constant 0 : i32
    %c0_i32_0 = arith.constant 0 : i32
    %c0_i32_1 = arith.constant 0 : i32
    return %c0_i32, %c0_i32_0 : i32, i32
  }
  func.func @transform_5(%arg0: i32) -> (i32, i32) {
    %c0_i32 = arith.constant 0 : i32
    %c0_i32_0 = arith.constant 0 : i32
    %c0_i32_1 = arith.constant 0 : i32
    return %c0_i32, %c0_i32_0 : i32, i32
  }
  func.func @transform_6(%arg0: i32) -> (i32, i32) {
    %c0_i32 = arith.constant 0 : i32
    %c0_i32_0 = arith.constant 0 : i32
    %c0_i32_1 = arith.constant 0 : i32
    return %c0_i32, %c0_i32_0 : i32, i32
  }
  func.func @transform_7(%arg0: i32) -> (i32, i32) {
    %c0_i32 = arith.constant 0 : i32
    %c0_i32_0 = arith.constant 0 : i32
    %c0_i32_1 = arith.constant 0 : i32
    return %c0_i32, %c0_i32_0 : i32, i32
  }
  func.func @transform_8(%arg0: i32) -> (i32, i32) {
    %c0_i32 = arith.constant 0 : i32
    %c0_i32_0 = arith.constant 0 : i32
    return %c0_i32, %arg0 : i32, i32
  }
}

</mosaic_0001>

<llo_original>
// kernel: tpu_custom_call.1
$region0: #{tpu_custom_call.1}
  #allocation0 [shape = 'u32[]', space=smem, size = 0x4, offset = 0x4, fixed_abs, tag = 'smem constant byte address 0x4 - core index']
  #allocation1 [shape = 'u32[144,128]{1,0:T(1,128)}', space=vmem, size = 0x12000, scoped, tag = 'internal scratch']
  %s0 = inlined_call_operand.vmem [shape: f32[8,512], index: 0, kind: input, shape index: {}]
  %s1 = inlined_call_operand.vmem [shape: f32[2,16,1], index: 1, kind: input, shape index: {}]
  %s2 = inlined_call_operand.vmem [shape: f32[9,1,256], index: 2, kind: input, shape index: {}]
  %s3 = inlined_call_operand.vmem [shape: f32[8,2], index: 3, kind: input, shape index: {}]
  %s4 = inlined_call_operand.vmem [shape: bf16[16,72], index: 4, kind: input, shape index: {}]
  %s5 = inlined_call_operand.vmem [shape: f32[16,3], index: 5, kind: input, shape index: {}]
  %s6 = inlined_call_operand.vmem [shape: bf16[16,144], index: 6, kind: input, shape index: {}]
  %s7 = inlined_call_operand.vmem [shape: bf16[16,8], index: 7, kind: input, shape index: {}]
  %s8 = inlined_call_operand.hbm [shape: f32[16,512], index: 8, kind: output, shape index: {}]
  %s9 = sld [smem:[#allocation0]]
  $region65: #{tpu_custom_call.1} parent=0
    _
  %s11 = ssub.s32 1, %s9
  %s12 = scalar_select 0, %s11, %s9
  $region1: #{tpu_custom_call.1} parent=0
    #allocation2 [shape = 'u8[32768]{0}', space=vmem, size = 0x8000, scoped, tag = 'output window, operand 0']
    #allocation3 [shape = 's32[2]{0}', space=sflag, size = 0x8, scoped, tag = 'scoped memory for tpu_custom_call.1']
    %13 = vsyncpa [#allocation3], 0
    %s14 = scalar_lea.sflag [#allocation3], 1
    %15 = vsyncpa %s14, 0
    loop: start=0, step=1, limit=4
    $region2: #{tpu_custom_call.1} parent=1 // loop_pre_header
      _
    $region3: #{tpu_custom_call.1} parent=1 // loop_header
      %s17 = sphi 0, %s21
      %p18 = scmp.ge.s32.totalorder %s17, 4
      %s27 = sphi 0, %s29
      %s30 = sphi 0, %s27
      %s31 = sphi 0, %s30
      %s47 = sphi 0, %s31
      %s53 = sphi 0, %s55
      %s56 = sphi 0, %s53
      %s57 = sphi 0, %s56
      %s73 = sphi 0, %s57
      %s77 = sphi 0, %s77
      %s79 = sphi 0, %s77
      %s80 = sphi 0, %s79
      %s94 = sphi 0, %s80
      %s98 = sphi 0, %s98
      %s100 = sphi 0, %s98
      %s101 = sphi 0, %s100
      %s115 = sphi 0, %s101
      %s119 = sphi 0, %s119
      %s121 = sphi 0, %s119
      %s122 = sphi 0, %s121
      %s136 = sphi 0, %s122
      %s140 = sphi 0, %s140
      %s142 = sphi 0, %s140
      %s143 = sphi 0, %s142
      %s157 = sphi 0, %s143
      %s161 = sphi 0, %s161
      %s163 = sphi 0, %s161
      %s164 = sphi 0, %s163
      %s178 = sphi 0, %s164
      %s182 = sphi 0, %s182
      %s184 = sphi 0, %s182
      %s185 = sphi 0, %s184
      %s199 = sphi 0, %s185
      %s205 = sphi 0, %s207
      %s208 = sphi 0, %s205
      %s209 = sphi 0, %s208
      %s225 = sphi 0, %s209
    $region4: #{tpu_custom_call.1} parent=1 // loop_header_branch
      %20 = sbr.rel (%p18) target = $region8
    $region5: #{tpu_custom_call.1} parent=1 // loop_body
      %s22 = ssub.s32 %s17, 1
      %s23 = ssub.s32 %s17, 2
      %s24 = sadd.s32 %s17, 1
      %s25 = ssub.s32 %s17, %s24
      %p26 = scmp.eq.s32.totalorder %s25, 0
      %s28 = sadd.s32 %s27, 1
      %s29 = scalar_select %p26, %s27, %s28
      %p32 = pneg %p26
      %p33 = scmp.eq.s32.totalorder %s17, 1
      %p34 = por %p32, %p33
      %p35 = scmp.ne.s32.totalorder %s27, %s30
      %p36 = scmp.eq.s32.totalorder %s17, 0
      %p37 = por %p35, %p36
      %p38 = scmp.ne.s32.totalorder %s27, %s30
      %p39 = scmp.eq.s32.totalorder %s22, 1
      %p40 = por %p38, %p39
      %p41 = scmp.ne.s32.totalorder %s30, %s31
      %p42 = scmp.eq.s32.totalorder %s22, 0
      %p43 = por %p41, %p42
      %p44 = scmp.ne.s32.totalorder %s30, %s31
      %p45 = scmp.eq.s32.totalorder %s23, 1
      %p46 = por %p44, %p45
      %p48 = scmp.ne.s32.totalorder %s31, %s47
      %p49 = scmp.eq.s32.totalorder %s23, 0
      %p50 = por %p48, %p49
      %s51 = ssub.s32 %s17, %s24
      %p52 = scmp.eq.s32.totalorder %s51, 0
      %s54 = sadd.s32 %s53, 1
      %s55 = scalar_select %p52, %s53, %s54
      %p58 = pneg %p52
      %p59 = scmp.eq.s32.totalorder %s17, 1
      %p60 = por %p58, %p59
      %p61 = scmp.ne.s32.totalorder %s53, %s56
      %p62 = scmp.eq.s32.totalorder %s17, 0
      %p63 = por %p61, %p62
      %p64 = scmp.ne.s32.totalorder %s53, %s56
      %p65 = scmp.eq.s32.totalorder %s22, 1
      %p66 = por %p64, %p65
      %p67 = scmp.ne.s32.totalorder %s56, %s57
      %p68 = scmp.eq.s32.totalorder %s22, 0
      %p69 = por %p67, %p68
      %p70 = scmp.ne.s32.totalorder %s56, %s57
      %p71 = scmp.eq.s32.totalorder %s23, 1
      %p72 = por %p70, %p71
      %p74 = scmp.ne.s32.totalorder %s57, %s73
      %p75 = scmp.eq.s32.totalorder %s23, 0
      %p76 = por %p74, %p75
      %s78 = sadd.s32 %s77, 1
      %p81 = scmp.eq.s32.totalorder %s17, 1
      %p82 = scmp.ne.s32.totalorder %s77, %s79
      %p83 = scmp.eq.s32.totalorder %s17, 0
      %p84 = por %p82, %p83
      %p85 = scmp.ne.s32.totalorder %s77, %s79
      %p86 = scmp.eq.s32.totalorder %s22, 1
      %p87 = por %p85, %p86
      %p88 = scmp.ne.s32.totalorder %s79, %s80
      %p89 = scmp.eq.s32.totalorder %s22, 0
      %p90 = por %p88, %p89
      %p91 = scmp.ne.s32.totalorder %s79, %s80
      %p92 = scmp.eq.s32.totalorder %s23, 1
      %p93 = por %p91, %p92
      %p95 = scmp.ne.s32.totalorder %s80, %s94
      %p96 = scmp.eq.s32.totalorder %s23, 0
      %p97 = por %p95, %p96
      %s99 = sadd.s32 %s98, 1
      %p102 = scmp.eq.s32.totalorder %s17, 1
      %p103 = scmp.ne.s32.totalorder %s98, %s100
      %p104 = scmp.eq.s32.totalorder %s17, 0
      %p105 = por %p103, %p104
      %p106 = scmp.ne.s32.totalorder %s98, %s100
      %p107 = scmp.eq.s32.totalorder %s22, 1
      %p108 = por %p106, %p107
      %p109 = scmp.ne.s32.totalorder %s100, %s101
      %p110 = scmp.eq.s32.totalorder %s22, 0
      %p111 = por %p109, %p110
      %p112 = scmp.ne.s32.totalorder %s100, %s101
      %p113 = scmp.eq.s32.totalorder %s23, 1
      %p114 = por %p112, %p113
      %p116 = scmp.ne.s32.totalorder %s101, %s115
      %p117 = scmp.eq.s32.totalorder %s23, 0
      %p118 = por %p116, %p117
      %s120 = sadd.s32 %s119, 1
      %p123 = scmp.eq.s32.totalorder %s17, 1
      %p124 = scmp.ne.s32.totalorder %s119, %s121
      %p125 = scmp.eq.s32.totalorder %s17, 0
      %p126 = por %p124, %p125
      %p127 = scmp.ne.s32.totalorder %s119, %s121
      %p128 = scmp.eq.s32.totalorder %s22, 1
      %p129 = por %p127, %p128
      %p130 = scmp.ne.s32.totalorder %s121, %s122
      %p131 = scmp.eq.s32.totalorder %s22, 0
      %p132 = por %p130, %p131
      %p133 = scmp.ne.s32.totalorder %s121, %s122
      %p134 = scmp.eq.s32.totalorder %s23, 1
      %p135 = por %p133, %p134
      %p137 = scmp.ne.s32.totalorder %s122, %s136
      %p138 = scmp.eq.s32.totalorder %s23, 0
      %p139 = por %p137, %p138
      %s141 = sadd.s32 %s140, 1
      %p144 = scmp.eq.s32.totalorder %s17, 1
      %p145 = scmp.ne.s32.totalorder %s140, %s142
      %p146 = scmp.eq.s32.totalorder %s17, 0
      %p147 = por %p145, %p146
      %p148 = scmp.ne.s32.totalorder %s140, %s142
      %p149 = scmp.eq.s32.totalorder %s22, 1
      %p150 = por %p148, %p149
      %p151 = scmp.ne.s32.totalorder %s142, %s143
      %p152 = scmp.eq.s32.totalorder %s22, 0
      %p153 = por %p151, %p152
      %p154 = scmp.ne.s32.totalorder %s142, %s143
      %p155 = scmp.eq.s32.totalorder %s23, 1
      %p156 = por %p154, %p155
      %p158 = scmp.ne.s32.totalorder %s143, %s157
      %p159 = scmp.eq.s32.totalorder %s23, 0
      %p160 = por %p158, %p159
      %s162 = sadd.s32 %s161, 1
      %p165 = scmp.eq.s32.totalorder %s17, 1
      %p166 = scmp.ne.s32.totalorder %s161, %s163
      %p167 = scmp.eq.s32.totalorder %s17, 0
      %p168 = por %p166, %p167
      %p169 = scmp.ne.s32.totalorder %s161, %s163
      %p170 = scmp.eq.s32.totalorder %s22, 1
      %p171 = por %p169, %p170
      %p172 = scmp.ne.s32.totalorder %s163, %s164
      %p173 = scmp.eq.s32.totalorder %s22, 0
      %p174 = por %p172, %p173
      %p175 = scmp.ne.s32.totalorder %s163, %s164
      %p176 = scmp.eq.s32.totalorder %s23, 1
      %p177 = por %p175, %p176
      %p179 = scmp.ne.s32.totalorder %s164, %s178
      %p180 = scmp.eq.s32.totalorder %s23, 0
      %p181 = por %p179, %p180
      %s183 = sadd.s32 %s182, 1
      %p186 = scmp.eq.s32.totalorder %s17, 1
      %p187 = scmp.ne.s32.totalorder %s182, %s184
      %p188 = scmp.eq.s32.totalorder %s17, 0
      %p189 = por %p187, %p188
      %p190 = scmp.ne.s32.totalorder %s182, %s184
      %p191 = scmp.eq.s32.totalorder %s22, 1
      %p192 = por %p190, %p191
      %p193 = scmp.ne.s32.totalorder %s184, %s185
      %p194 = scmp.eq.s32.totalorder %s22, 0
      %p195 = por %p193, %p194
      %p196 = scmp.ne.s32.totalorder %s184, %s185
      %p197 = scmp.eq.s32.totalorder %s23, 1
      %p198 = por %p196, %p197
      %p200 = scmp.ne.s32.totalorder %s185, %s199
      %p201 = scmp.eq.s32.totalorder %s23, 0
      %p202 = por %p200, %p201
      %s203 = ssub.s32 %s17, %s24
      %p204 = scmp.eq.s32.totalorder %s203, 0
      %s206 = sadd.s32 %s205, 1
      %s207 = scalar_select %p204, %s205, %s206
      %p210 = pneg %p204
      %p211 = scmp.eq.s32.totalorder %s17, 1
      %p212 = por %p210, %p211
      %p213 = scmp.ne.s32.totalorder %s205, %s208
      %p214 = scmp.eq.s32.totalorder %s17, 0
      %p215 = por %p213, %p214
      %p216 = scmp.ne.s32.totalorder %s205, %s208
      %p217 = scmp.eq.s32.totalorder %s22, 1
      %p218 = por %p216, %p217
      %p219 = scmp.ne.s32.totalorder %s208, %s209
      %p220 = scmp.eq.s32.totalorder %s22, 0
      %p221 = por %p219, %p220
      %p222 = scmp.ne.s32.totalorder %s208, %s209
      %p223 = scmp.eq.s32.totalorder %s23, 1
      %p224 = por %p222, %p223
      %p226 = scmp.ne.s32.totalorder %s209, %s225
      %p227 = scmp.eq.s32.totalorder %s23, 0
      %p228 = por %p226, %p227
      %p229 = scmp.le.s32.totalorder 1, %s17
      %p230 = scmp.lt.s32.totalorder %s17, 3
      %p231 = pnand %p229, %p230
      %p232 = pneg %p231
      // Predicated region
      $region9: #{tpu_custom_call.1} parent=5 // pred_check
        _
      $region10: #{tpu_custom_call.1} parent=5 // pred_check_branch
        %234 = sbr.rel (%p231) target = $region12
      $region11: #{tpu_custom_call.1} parent=5 // pred_region
        %s235 = ssub.s32 %s17, 1
        // Predicated region
        $region13: #{tpu_custom_call.1} parent=11 // pred_check
          %p236 = pneg %p90
        $region14: #{tpu_custom_call.1} parent=11 // pred_check_branch
          %238 = sbr.rel (%p236) target = $region16
        $region15: #{tpu_custom_call.1} parent=11 // pred_region
          _
        $region16: #{tpu_custom_call.1} parent=11 // pred_fallthru
          _
        // Predicated region
        $region17: #{tpu_custom_call.1} parent=11 // pred_check
          %p239 = pneg %p111
        $region18: #{tpu_custom_call.1} parent=11 // pred_check_branch
          %241 = sbr.rel (%p239) target = $region20
        $region19: #{tpu_custom_call.1} parent=11 // pred_region
          _
        $region20: #{tpu_custom_call.1} parent=11 // pred_fallthru
          _
        // Predicated region
        $region21: #{tpu_custom_call.1} parent=11 // pred_check
          %p242 = pneg %p132
        $region22: #{tpu_custom_call.1} parent=11 // pred_check_branch
          %244 = sbr.rel (%p242) target = $region24
        $region23: #{tpu_custom_call.1} parent=11 // pred_region
          _
        $region24: #{tpu_custom_call.1} parent=11 // pred_fallthru
          _
        // Predicated region
        $region25: #{tpu_custom_call.1} parent=11 // pred_check
          %p245 = pneg %p153
        $region26: #{tpu_custom_call.1} parent=11 // pred_check_branch
          %247 = sbr.rel (%p245) target = $region28
        $region27: #{tpu_custom_call.1} parent=11 // pred_region
          _
        $region28: #{tpu_custom_call.1} parent=11 // pred_fallthru
          _
        // Predicated region
        $region29: #{tpu_custom_call.1} parent=11 // pred_check
          %p248 = pneg %p174
        $region30: #{tpu_custom_call.1} parent=11 // pred_check_branch
          %250 = sbr.rel (%p248) target = $region32
        $region31: #{tpu_custom_call.1} parent=11 // pred_region
          _
        $region32: #{tpu_custom_call.1} parent=11 // pred_fallthru
          _
        // Predicated region
        $region33: #{tpu_custom_call.1} parent=11 // pred_check
          %p251 = pneg %p195
        $region34: #{tpu_custom_call.1} parent=11 // pred_check_branch
          %253 = sbr.rel (%p251) target = $region36
        $region35: #{tpu_custom_call.1} parent=11 // pred_region
          _
        $region36: #{tpu_custom_call.1} parent=11 // pred_fallthru
          _
      $region12: #{tpu_custom_call.1} parent=5 // pred_fallthru
        _
      %p254 = scmp.lt.s32.totalorder %s17, 2
      // Predicated region
      $region37: #{tpu_custom_call.1} parent=5 // pred_check
        %p255 = pneg %p254
      $region38: #{tpu_custom_call.1} parent=5 // pred_check_branch
        %257 = sbr.rel (%p255) target = $region40
      $region39: #{tpu_custom_call.1} parent=5 // pred_region
        // Predicated region
        $region41: #{tpu_custom_call.1} parent=39 // pred_check
          %p258 = pneg %p37
        $region42: #{tpu_custom_call.1} parent=39 // pred_check_branch
          %260 = sbr.rel (%p258) target = $region44
        $region43: #{tpu_custom_call.1} parent=39 // pred_region
          %s261 = smul.u32 2, %s17
          %p262 = scmp.lt.s32.totalorder %s261, 3
          %s263 = scalar_select %p262, %s261, 3
          %s264 = smul.addr %s263, 8
          %s265 = scalar_lea.vmem %s0, %s264
          %s266 = smul.u32 2, %s17
        $region44: #{tpu_custom_call.1} parent=39 // pred_fallthru
          _
        // Predicated region
        $region45: #{tpu_custom_call.1} parent=39 // pred_check
          %p267 = pneg %p63
        $region46: #{tpu_custom_call.1} parent=39 // pred_check_branch
          %269 = sbr.rel (%p267) target = $region48
        $region47: #{tpu_custom_call.1} parent=39 // pred_region
          %p270 = scmp.lt.s32.totalorder %s17, 1
          %s271 = scalar_select %p270, %s17, 1
          %s272 = smul.addr %s271, 2
          %s273 = smul.addr %s272, 8
          %s274 = scalar_lea.vmem %s1, %s273
        $region48: #{tpu_custom_call.1} parent=39 // pred_fallthru
          _
      $region40: #{tpu_custom_call.1} parent=5 // pred_fallthru
        _
      %p275 = scmp.le.s32.totalorder 1, %s17
      %p276 = scmp.lt.s32.totalorder %s17, 3
      %p277 = pnand %p275, %p276
      %p278 = pneg %p277
      // Predicated region
      $region49: #{tpu_custom_call.1} parent=5 // pred_check
        _
      $region50: #{tpu_custom_call.1} parent=5 // pred_check_branch
        %280 = sbr.rel (%p277) target = $region52
      $region51: #{tpu_custom_call.1} parent=5 // pred_region
        %s281 = ssub.s32 %s17, 1
        %s282 = smul.u32 2, %s22
        %p283 = scmp.lt.s32.totalorder %s282, 3
        %s284 = scalar_select %p283, %s282, 3
        %s285 = smul.addr %s284, 8
        %s286 = scalar_lea.vmem %s0, %s285
        %p287 = pneg %p43
        %p288 = pneg %p40
        %p289 = scmp.lt.s32.totalorder %s22, 1
        %s290 = scalar_select %p289, %s22, 1
        %s291 = smul.addr %s290, 2
        %s292 = smul.addr %s291, 8
        %s293 = scalar_lea.vmem %s1, %s292
        %p294 = pneg %p69
        %p295 = pneg %p66
        %p296 = pneg %p90
        %p297 = pneg %p87
        %p298 = pneg %p111
        %p299 = pneg %p108
        %p300 = pneg %p132
        %p301 = pneg %p129
        %p302 = pneg %p153
        %p303 = pneg %p150
        %p304 = pneg %p174
        %p305 = pneg %p171
        %p306 = pneg %p195
        %p307 = pneg %p192
        %p308 = pneg %p221
        %p309 = pneg %p218
        %s310 = sand.u32 %s208, 1
        %s311 = scalar_lea.sflag [#allocation3], %s310
        %s312 = sand.u32 %s208, 1
        %s313 = smul.addr %s312, 32
        %s314 = scalar_lea.vmem [#allocation2], %s313
        %s315 = smul.u32 2, %s22
        %p316 = scmp.lt.s32.totalorder %s315, 3
        %s317 = scalar_select %p316, %s315, 3
        %s318 = smul.addr %s317, 8
        %s319 = scalar_lea.vmem %s0, %s318
        %s320 = smul.u32 2, %s22
        %p321 = scmp.lt.s32.totalorder %s22, 1
        %s322 = scalar_select %p321, %s22, 1
        %s323 = smul.addr %s322, 2
        %s324 = smul.addr %s323, 8
        %s325 = scalar_lea.vmem %s1, %s324
        %s326 = smul.u32 2, %s22
        %v328 = vld [vmem:[%s319] sm:$0xff]
        %v329 = vld [vmem:[%s319 + $0x8] sm:$0xff]
        %v330 = vld [vmem:[%s3] sm:$0xff]
        %vm331 = vcmask 1041408
        %v332 = vsel %vm331, %v328, 0.0
        %v333 = vsel %vm331, %v329, 0.0
        %v334 = vadd.f32 %v332, %v333
        %335 = vadd.xlane.f32.xlu0 %v334
        %v336 = vpop.xlane.xlu0 %335
        %v337 = vmul.f32 %v328, %v328
        %v338 = vmul.f32 %v329, %v329
        %v339 = vsel %vm331, %v337, 0.0
        %v340 = vsel %vm331, %v338, 0.0
        %v341 = vadd.f32 %v339, %v340
        %342 = vadd.xlane.f32.xlu0 %v341
        %v343 = vpop.xlane.xlu0 %342
        %v344 = vsel %vm331, %v336, 0.0
        %v345 = vrot.slane %v344, 4
        %v346 = vadd.f32 %v344, %v345
        %v347 = vrot.slane %v346, 2
        %v348 = vadd.f32 %v346, %v347
        %v349 = vrot.slane %v348, 1
        %v350 = vadd.f32 %v348, %v349
        %v351 = vmul.f32 %v350, 0.001953125
        %v352 = vsel %vm331, %v343, 0.0
        %v353 = vrot.slane %v352, 4
        %v354 = vadd.f32 %v352, %v353
        %v355 = vrot.slane %v354, 2
        %v356 = vadd.f32 %v354, %v355
        %v357 = vrot.slane %v356, 1
        %v358 = vadd.f32 %v356, %v357
        %v359 = vmul.f32 %v358, 0.001953125
        %v360 = vmul.f32 %v351, %v351
        %v361 = vsub.f32 %v359, %v360
        %v362 = vadd.f32 %v361, 1e-06
        %v363 = vrsqrt.pop %v362
        %v364 = vsub.f32 %v328, %v351
        %v365 = vsub.f32 %v329, %v351
        %v366 = vmul.f32 %v363, %v330
        %368 = vset.pattern.permute.xlu0 0
        %369 = vperm.xlu0 %368, %v366
        %v370 = vpop.permute.xlu0 %369
        %v372 = vmul.f32 %v364, %v370
        %v373 = vmul.f32 %v365, %v370
        %375 = vset.pattern.permute.xlu0 1
        %376 = vperm.xlu0 %375, %v330
        %v377 = vpop.permute.xlu0 %376
        %v379 = vadd.f32 %v372, %v377
        %v380 = vadd.f32 %v373, %v377
        %v381 = vxor.u32 %v379, 2147483648
        %v382 = vxor.u32 %v380, 2147483648
        %v383 = vmul.f32 %v381, 1.442695
        %v384 = vpow.pop %v383
        %v385 = vmul.f32 %v382, 1.442695
        %v386 = vpow.pop %v385
        %v387 = vadd.f32 %v384, 1.0
        %v388 = vadd.f32 %v386, 1.0
        %v389 = vrcp.pop %v387
        %v390 = vmul.f32 1.0, %v389
        %v391 = vrcp.pop %v388
        %v392 = vmul.f32 1.0, %v391
        %v393 = vmul.f32 %v379, %v390
        %v394 = vmul.f32 %v380, %v392
        %vm395 = vcmask 1043458
        %v396 = vsel %vm395, %v328, 0.0
        %v397 = vsel %vm395, %v329, 0.0
        %v398 = vadd.f32 %v396, %v397
        %399 = vadd.xlane.f32.xlu0 %v398
        %v400 = vpop.xlane.xlu0 %399
        %v401 = vsel %vm395, %v337, 0.0
        %v402 = vsel %vm395, %v338, 0.0
        %v403 = vadd.f32 %v401, %v402
        %404 = vadd.xlane.f32.xlu0 %v403
        %v405 = vpop.xlane.xlu0 %404
        %v407 = vrot.slane %v400, 2
        %v409 = vsel %vm331, %v407, 0.0
        %v410 = vrot.slane %v409, 4
        %v411 = vadd.f32 %v409, %v410
        %v412 = vrot.slane %v411, 2
        %v413 = vadd.f32 %v411, %v412
        %v414 = vrot.slane %v413, 1
        %v415 = vadd.f32 %v413, %v414
        %v416 = vmul.f32 %v415, 0.001953125
        %v418 = vrot.slane %v405, 2
        %v420 = vsel %vm331, %v418, 0.0
        %v421 = vrot.slane %v420, 4
        %v422 = vadd.f32 %v420, %v421
        %v423 = vrot.slane %v422, 2
        %v424 = vadd.f32 %v422, %v423
        %v425 = vrot.slane %v424, 1
        %v426 = vadd.f32 %v424, %v425
        %v427 = vmul.f32 %v426, 0.001953125
        %v428 = vmul.f32 %v416, %v416
        %v429 = vsub.f32 %v427, %v428
        %v430 = vadd.f32 %v429, 1e-06
        %v431 = vrsqrt.pop %v430
        %v432 = vsub.f32 %v328, %v416
        %v433 = vsub.f32 %v329, %v416
        %v434 = vmul.f32 %v431, %v330
        %436 = vset.pattern.permute.xlu0 0
        %437 = vperm.xlu0 %436, %v434
        %v438 = vpop.permute.xlu0 %437
        %v440 = vmul.f32 %v432, %v438
        %v441 = vmul.f32 %v433, %v438
        %v442 = vadd.f32 %v440, %v377
        %v443 = vadd.f32 %v441, %v377
        %v444 = vxor.u32 %v442, 2147483648
        %v445 = vxor.u32 %v443, 2147483648
        %v446 = vmul.f32 %v444, 1.442695
        %v447 = vpow.pop %v446
        %v448 = vmul.f32 %v445, 1.442695
        %v449 = vpow.pop %v448
        %v450 = vadd.f32 %v447, 1.0
        %v451 = vadd.f32 %v449, 1.0
        %v452 = vrcp.pop %v450
        %v453 = vmul.f32 1.0, %v452
        %v454 = vrcp.pop %v451
        %v455 = vmul.f32 1.0, %v454
        %v456 = vmul.f32 %v442, %v453
        %v457 = vmul.f32 %v443, %v455
        %vm458 = vcmask 1045508
        %v459 = vsel %vm458, %v328, 0.0
        %v460 = vsel %vm458, %v329, 0.0
        %v461 = vadd.f32 %v459, %v460
        %462 = vadd.xlane.f32.xlu0 %v461
        %v463 = vpop.xlane.xlu0 %462
        %v464 = vsel %vm458, %v337, 0.0
        %v465 = vsel %vm458, %v338, 0.0
        %v466 = vadd.f32 %v464, %v465
        %467 = vadd.xlane.f32.xlu0 %v466
        %v468 = vpop.xlane.xlu0 %467
        %v470 = vrot.slane %v463, 4
        %v472 = vsel %vm331, %v470, 0.0
        %v473 = vrot.slane %v472, 4
        %v474 = vadd.f32 %v472, %v473
        %v475 = vrot.slane %v474, 2
        %v476 = vadd.f32 %v474, %v475
        %v477 = vrot.slane %v476, 1
        %v478 = vadd.f32 %v476, %v477
        %v479 = vmul.f32 %v478, 0.001953125
        %v481 = vrot.slane %v468, 4
        %v483 = vsel %vm331, %v481, 0.0
        %v484 = vrot.slane %v483, 4
        %v485 = vadd.f32 %v483, %v484
        %v486 = vrot.slane %v485, 2
        %v487 = vadd.f32 %v485, %v486
        %v488 = vrot.slane %v487, 1
        %v489 = vadd.f32 %v487, %v488
        %v490 = vmul.f32 %v489, 0.001953125
        %v491 = vmul.f32 %v479, %v479
        %v492 = vsub.f32 %v490, %v491
        %v493 = vadd.f32 %v492, 1e-06
        %v494 = vrsqrt.pop %v493
        %v495 = vsub.f32 %v328, %v479
        %v496 = vsub.f32 %v329, %v479
        %v497 = vmul.f32 %v494, %v330
        %499 = vset.pattern.permute.xlu0 0
        %500 = vperm.xlu0 %499, %v497
        %v501 = vpop.permute.xlu0 %500
        %v503 = vmul.f32 %v495, %v501
        %v504 = vmul.f32 %v496, %v501
        %v505 = vadd.f32 %v503, %v377
        %v506 = vadd.f32 %v504, %v377
        %v507 = vxor.u32 %v505, 2147483648
        %v508 = vxor.u32 %v506, 2147483648
        %v509 = vmul.f32 %v507, 1.442695
        %v510 = vpow.pop %v509
        %v511 = vmul.f32 %v508, 1.442695
        %v512 = vpow.pop %v511
        %v513 = vadd.f32 %v510, 1.0
        %v514 = vadd.f32 %v512, 1.0
        %v515 = vrcp.pop %v513
        %v516 = vmul.f32 1.0, %v515
        %v517 = vrcp.pop %v514
        %v518 = vmul.f32 1.0, %v517
        %v519 = vmul.f32 %v505, %v516
        %v520 = vmul.f32 %v506, %v518
        %vm521 = vcmask 1047558
        %v522 = vsel %vm521, %v328, 0.0
        %v523 = vsel %vm521, %v329, 0.0
        %v524 = vadd.f32 %v522, %v523
        %525 = vadd.xlane.f32.xlu0 %v524
        %v526 = vpop.xlane.xlu0 %525
        %v527 = vsel %vm521, %v337, 0.0
        %v528 = vsel %vm521, %v338, 0.0
        %v529 = vadd.f32 %v527, %v528
        %530 = vadd.xlane.f32.xlu0 %v529
        %v531 = vpop.xlane.xlu0 %530
        %v533 = vrot.slane %v526, 6
        %v535 = vsel %vm331, %v533, 0.0
        %v536 = vrot.slane %v535, 4
        %v537 = vadd.f32 %v535, %v536
        %v538 = vrot.slane %v537, 2
        %v539 = vadd.f32 %v537, %v538
        %v540 = vrot.slane %v539, 1
        %v541 = vadd.f32 %v539, %v540
        %v542 = vmul.f32 %v541, 0.001953125
        %v544 = vrot.slane %v531, 6
        %v546 = vsel %vm331, %v544, 0.0
        %v547 = vrot.slane %v546, 4
        %v548 = vadd.f32 %v546, %v547
        %v549 = vrot.slane %v548, 2
        %v550 = vadd.f32 %v548, %v549
        %v551 = vrot.slane %v550, 1
        %v552 = vadd.f32 %v550, %v551
        %v553 = vmul.f32 %v552, 0.001953125
        %v554 = vmul.f32 %v542, %v542
        %v555 = vsub.f32 %v553, %v554
        %v556 = vadd.f32 %v555, 1e-06
        %v557 = vrsqrt.pop %v556
        %v558 = vsub.f32 %v328, %v542
        %v559 = vsub.f32 %v329, %v542
        %v560 = vmul.f32 %v557, %v330
        %562 = vset.pattern.permute.xlu0 0
        %563 = vperm.xlu0 %562, %v560
        %v564 = vpop.permute.xlu0 %563
        %v566 = vmul.f32 %v558, %v564
        %v567 = vmul.f32 %v559, %v564
        %v568 = vadd.f32 %v566, %v377
        %v569 = vadd.f32 %v567, %v377
        %v570 = vxor.u32 %v568, 2147483648
        %v571 = vxor.u32 %v569, 2147483648
        %v572 = vmul.f32 %v570, 1.442695
        %v573 = vpow.pop %v572
        %v574 = vmul.f32 %v571, 1.442695
        %v575 = vpow.pop %v574
        %v576 = vadd.f32 %v573, 1.0
        %v577 = vadd.f32 %v575, 1.0
        %v578 = vrcp.pop %v576
        %v579 = vmul.f32 1.0, %v578
        %v580 = vrcp.pop %v577
        %v581 = vmul.f32 1.0, %v580
        %v582 = vmul.f32 %v568, %v579
        %v583 = vmul.f32 %v569, %v581
        %v584 = vsel %vm331, %v393, %v456
        %v585 = vsel %vm331, %v394, %v457
        %vm586 = vcmask 1043456
        %v587 = vsel %vm586, %v584, %v519
        %v588 = vsel %vm586, %v585, %v520
        %vm589 = vcmask 1045504
        %v590 = vsel %vm589, %v587, %v582
        %v591 = vsel %vm589, %v588, %v583
        %592 = vrot.lane.b32.xlu0 %v590, 17
        %v593 = vpop.permute.xlu0 %592
        %594 = vrot.lane.b32.xlu0 %v591, 17
        %v595 = vpop.permute.xlu0 %594
        %v596 = vlaneseq
        %v597 = vand.u32 %v596, 127
        %vm598 = vcmp.lt.s32.totalorder %v597, 17
        %v599 = vsel %vm598, %v593, %v595
        %v600 = vsel %vm598, %v595, %v593
        %v601 = vld [vmem:[%s2] sm:$0x3]
        %v603 = vlaneseq
        %v604 = vshrl.u32 %v603, 7
        %v605 = vsub.s32 0, %v604
        %v606 = vrot.slane %v601, %v605
        %v607 = vlaneseq
        %v608 = vshrl.u32 %v607, 7
        %v609 = vsub.s32 1, %v608
        %v610 = vrot.slane %v601, %v609
        %v613 = vmul.f32 %v600, %v606
        %v614 = vmul.f32 %v599, %v610
        %v615 = vpack.c.bf16 %v613, %v613
        %v616 = vpack.c.bf16 %v614, %v614
        %617 = vrot.lane.b32.xlu0 %v590, 16
        %v618 = vpop.permute.xlu0 %617
        %619 = vrot.lane.b32.xlu0 %v591, 16
        %v620 = vpop.permute.xlu0 %619
        %vm621 = vcmp.lt.s32.totalorder %v597, 16
        %v622 = vsel %vm621, %v618, %v620
        %v623 = vsel %vm621, %v620, %v618
        %s624 = scalar_lea.vmem %s2, 2
        %v625 = vld [vmem:[%s624] sm:$0x3]
        %v627 = vlaneseq
        %v628 = vshrl.u32 %v627, 7
        %v629 = vsub.s32 0, %v628
        %v630 = vrot.slane %v625, %v629
        %v631 = vlaneseq
        %v632 = vshrl.u32 %v631, 7
        %v633 = vsub.s32 1, %v632
        %v634 = vrot.slane %v625, %v633
        %v637 = vmul.f32 %v623, %v630
        %v638 = vmul.f32 %v622, %v634
        %v639 = vpack.c.bf16 %v637, %v637
        %v640 = vpack.c.bf16 %v638, %v638
        %641 = vrot.lane.b32.xlu0 %v590, 15
        %v642 = vpop.permute.xlu0 %641
        %643 = vrot.lane.b32.xlu0 %v591, 15
        %v644 = vpop.permute.xlu0 %643
        %vm645 = vcmp.lt.s32.totalorder %v597, 15
        %v646 = vsel %vm645, %v642, %v644
        %v647 = vsel %vm645, %v644, %v642
        %s648 = scalar_lea.vmem %s2, 4
        %v649 = vld [vmem:[%s648] sm:$0x3]
        %v651 = vlaneseq
        %v652 = vshrl.u32 %v651, 7
        %v653 = vsub.s32 0, %v652
        %v654 = vrot.slane %v649, %v653
        %v655 = vlaneseq
        %v656 = vshrl.u32 %v655, 7
        %v657 = vsub.s32 1, %v656
        %v658 = vrot.slane %v649, %v657
        %v661 = vmul.f32 %v647, %v654
        %v662 = vmul.f32 %v646, %v658
        %v663 = vpack.c.bf16 %v661, %v661
        %v664 = vpack.c.bf16 %v662, %v662
        %665 = vrot.lane.b32.xlu0 %v590, 1
        %v666 = vpop.permute.xlu0 %665
        %667 = vrot.lane.b32.xlu0 %v591, 1
        %v668 = vpop.permute.xlu0 %667
        %vm669 = vcmp.lt.s32.totalorder %v597, 1
        %v670 = vsel %vm669, %v666, %v668
        %v671 = vsel %vm669, %v668, %v666
        %s672 = scalar_lea.vmem %s2, 6
        %v673 = vld [vmem:[%s672] sm:$0x3]
        %v675 = vlaneseq
        %v676 = vshrl.u32 %v675, 7
        %v677 = vsub.s32 0, %v676
        %v678 = vrot.slane %v673, %v677
        %v679 = vlaneseq
        %v680 = vshrl.u32 %v679, 7
        %v681 = vsub.s32 1, %v680
        %v682 = vrot.slane %v673, %v681
        %v685 = vmul.f32 %v671, %v678
        %v686 = vmul.f32 %v670, %v682
        %v687 = vpack.c.bf16 %v685, %v685
        %v688 = vpack.c.bf16 %v686, %v686
        %v689 = vpack.c.bf16 %v590, %v590
        %v690 = vpack.c.bf16 %v591, %v591
        %691 = vrot.lane.b32.xlu0 %v590, 127
        %v692 = vpop.permute.xlu0 %691
        %693 = vrot.lane.b32.xlu0 %v591, 127
        %v694 = vpop.permute.xlu0 %693
        %vm695 = vcmp.lt.s32.totalorder %v597, 127
        %v696 = vsel %vm695, %v692, %v694
        %v697 = vsel %vm695, %v694, %v692
        %s698 = scalar_lea.vmem %s2, 10
        %v699 = vld [vmem:[%s698] sm:$0x3]
        %v701 = vlaneseq
        %v702 = vshrl.u32 %v701, 7
        %v703 = vsub.s32 0, %v702
        %v704 = vrot.slane %v699, %v703
        %v705 = vlaneseq
        %v706 = vshrl.u32 %v705, 7
        %v707 = vsub.s32 1, %v706
        %v708 = vrot.slane %v699, %v707
        %v711 = vmul.f32 %v696, %v704
        %v712 = vmul.f32 %v697, %v708
        %v713 = vpack.c.bf16 %v711, %v711
        %v714 = vpack.c.bf16 %v712, %v712
        %715 = vrot.lane.b32.xlu0 %v590, 113
        %v716 = vpop.permute.xlu0 %715
        %717 = vrot.lane.b32.xlu0 %v591, 113
        %v718 = vpop.permute.xlu0 %717
        %vm719 = vcmp.lt.s32.totalorder %v597, 113
        %v720 = vsel %vm719, %v716, %v718
        %v721 = vsel %vm719, %v718, %v716
        %s722 = scalar_lea.vmem %s2, 12
        %v723 = vld [vmem:[%s722] sm:$0x3]
        %v725 = vlaneseq
        %v726 = vshrl.u32 %v725, 7
        %v727 = vsub.s32 0, %v726
        %v728 = vrot.slane %v723, %v727
        %v729 = vlaneseq
        %v730 = vshrl.u32 %v729, 7
        %v731 = vsub.s32 1, %v730
        %v732 = vrot.slane %v723, %v731
        %v735 = vmul.f32 %v720, %v728
        %v736 = vmul.f32 %v721, %v732
        %v737 = vpack.c.bf16 %v735, %v735
        %v738 = vpack.c.bf16 %v736, %v736
        %739 = vrot.lane.b32.xlu0 %v590, 112
        %v740 = vpop.permute.xlu0 %739
        %741 = vrot.lane.b32.xlu0 %v591, 112
        %v742 = vpop.permute.xlu0 %741
        %vm743 = vcmp.lt.s32.totalorder %v597, 112
        %v744 = vsel %vm743, %v740, %v742
        %v745 = vsel %vm743, %v742, %v740
        %s746 = scalar_lea.vmem %s2, 14
        %v747 = vld [vmem:[%s746] sm:$0x3]
        %v749 = vlaneseq
        %v750 = vshrl.u32 %v749, 7
        %v751 = vsub.s32 0, %v750
        %v752 = vrot.slane %v747, %v751
        %v753 = vlaneseq
        %v754 = vshrl.u32 %v753, 7
        %v755 = vsub.s32 1, %v754
        %v756 = vrot.slane %v747, %v755
        %v759 = vmul.f32 %v744, %v752
        %v760 = vmul.f32 %v745, %v756
        %v761 = vpack.c.bf16 %v759, %v759
        %v762 = vpack.c.bf16 %v760, %v760
        %763 = vrot.lane.b32.xlu0 %v590, 111
        %v764 = vpop.permute.xlu0 %763
        %765 = vrot.lane.b32.xlu0 %v591, 111
        %v766 = vpop.permute.xlu0 %765
        %vm767 = vcmp.lt.s32.totalorder %v597, 111
        %v768 = vsel %vm767, %v764, %v766
        %v769 = vsel %vm767, %v766, %v764
        %s770 = scalar_lea.vmem %s2, 16
        %v771 = vld [vmem:[%s770] sm:$0x3]
        %v773 = vlaneseq
        %v774 = vshrl.u32 %v773, 7
        %v775 = vsub.s32 0, %v774
        %v776 = vrot.slane %v771, %v775
        %v777 = vlaneseq
        %v778 = vshrl.u32 %v777, 7
        %v779 = vsub.s32 1, %v778
        %v780 = vrot.slane %v771, %v779
        %v783 = vmul.f32 %v768, %v776
        %v784 = vmul.f32 %v769, %v780
        %v785 = vpack.c.bf16 %v783, %v783
        %v786 = vpack.c.bf16 %v784, %v784
        %v789 = vrot.slane %v639, 4
        %v790 = vrot.slane %v640, 4
        %v793 = vrot.slane %v687, 4
        %v794 = vrot.slane %v688, 4
        %v797 = vrot.slane %v713, 4
        %v798 = vrot.slane %v714, 4
        %v801 = vrot.slane %v761, 4
        %v802 = vrot.slane %v762, 4
        %v805 = vsel %vm586, %v615, %v789
        %v809 = vsel %vm586, %v616, %v790
        %v813 = vsel %vm586, %v663, %v793
        %v817 = vsel %vm586, %v664, %v794
        %v821 = vsel %vm586, %v689, %v797
        %v825 = vsel %vm586, %v690, %v798
        %v829 = vsel %vm586, %v737, %v801
        %v833 = vsel %vm586, %v738, %v802
        %v835 = vld [vmem:[%s4] sm:$0xf]
        %v836 = vld [vmem:[%s4 + $0x4] sm:$0xf]
        %v837 = vld [vmem:[%s5] sm:$0xff]
        %v838 = vld [vmem:[%s5 + $0x8] sm:$0xff]
        %v839 = vld [vmem:[%s325] sm:$0xff]
        %v840 = vld [vmem:[%s325 + $0x8] sm:$0xff]
        %842 = vset.pattern.permute.xlu0 0
        %843 = vperm.xlu0 %842, %v839
        %v844 = vpop.permute.xlu0 %843
        %847 = vset.pattern.permute.xlu0 0
        %848 = vperm.xlu0 %847, %v840
        %v849 = vpop.permute.xlu0 %848
        %v853 = vunpack.c.l.b16 %v835
        %v854 = vunpack.c.l.b16 %v836
        %v855 = vpack.c.b16 %v854, %v853
        %vm856 = vcmask 588800
        %v858 = vsel %vm856, %v855, 0
        %v861 = vsel %vm586, %v785, 0
        %v864 = vsel %vm586, %v786, 0
        %866 = vmatprep.subr.bf16.mxu0 %v809
        %867 = vmatpush1.bf16.msra.mxu0 %v805
        %868 = vmatprep.subr.bf16.mxu0 %v817
        %869 = vmatpush1.bf16.msra.mxu0 %v813
        %870 = vmatprep.subr.bf16.mxu0 %v825
        %871 = vmatpush1.bf16.msra.mxu0 %v821
        %872 = vmatprep.subr.bf16.mxu0 %v833
        %873 = vmatpush1.bf16.msra.mxu0 %v829
        %874 = vmatprep.subr.bf16.mxu0 %v864
        %875 = vmatpush1.bf16.msra.mxu0 %v861
        %876 = vmatprep.subr.bf16.mxu0 0
        %877 = vmatpush1.bf16.msra.mxu0 0
        %878 = vmatprep.subr.bf16.mxu0 0
        %879 = vmatpush1.bf16.msra.mxu0 0
        %880 = vmatprep.subr.bf16.mxu0 0
        %881 = vmatpush1.bf16.msra.mxu0 0
        %882 = vmatprep.subr.bf16.mxu0 0
        %883 = vmatpush1.bf16.msra.mxu0 0
        %884 = vmatprep.subr.bf16.mxu0 0
        %885 = vmatpush1.bf16.msra.mxu0 0
        %886 = vmatprep.subr.bf16.mxu0 0
        %887 = vmatpush1.bf16.msra.mxu0 0
        %888 = vmatprep.subr.bf16.mxu0 0
        %889 = vmatpush1.bf16.msra.mxu0 0
        %890 = vmatprep.subr.bf16.mxu0 0
        %891 = vmatpush1.bf16.msra.mxu0 0
        %892 = vmatprep.subr.bf16.mxu0 0
        %893 = vmatpush1.bf16.msra.mxu0 0
        %894 = vmatprep.subr.bf16.mxu0 0
        %895 = vmatpush1.bf16.msra.mxu0 0
        %896 = vmatprep.subr.bf16.mxu0 0
        %897 = vmatpush1.bf16.msra.mxu0 0
        %898 = vmatprep.mubr.bf16.mxu0 0
        %899 = vmatmul.mubr.bf16.gmra.mrb[0].mxu0 %v858
        %v900 = vpop.f32.mrb[0].mxu0
        %v901 = vadd.f32 %v844, %v900
        %v902 = vpop.f32.mrb[0].mxu0
        %v903 = vadd.f32 %v844, %v902
        %v904 = vpop.f32.mrb[0].mxu0
        %v905 = vadd.f32 %v849, %v904
        %v906 = vpop.f32.mrb[0].mxu0
        %v907 = vadd.f32 %v849, %v906
        %908 = vdwg.mxu0
        %v909 = vsel %vm586, %v901, 0.0
        %v910 = vsel %vm586, %v903, 0.0
        %v911 = vadd.f32 %v909, %v910
        %912 = vadd.xlane.f32.xlu0 %v911
        %v913 = vpop.xlane.xlu0 %912
        %v914 = vmul.f32 %v901, %v901
        %v915 = vmul.f32 %v903, %v903
        %v916 = vsel %vm586, %v914, 0.0
        %v917 = vsel %vm586, %v915, 0.0
        %v918 = vadd.f32 %v916, %v917
        %919 = vadd.xlane.f32.xlu0 %v918
        %v920 = vpop.xlane.xlu0 %919
        %v921 = vsel %vm586, %v913, 0.0
        %v922 = vrot.slane %v921, 4
        %v923 = vadd.f32 %v921, %v922
        %v924 = vrot.slane %v923, 2
        %v925 = vadd.f32 %v923, %v924
        %v926 = vrot.slane %v925, 1
        %v927 = vadd.f32 %v925, %v926
        %v928 = vmul.f32 %v927, 0.0009765625
        %v929 = vsel %vm586, %v920, 0.0
        %v930 = vrot.slane %v929, 4
        %v931 = vadd.f32 %v929, %v930
        %v932 = vrot.slane %v931, 2
        %v933 = vadd.f32 %v931, %v932
        %v934 = vrot.slane %v933, 1
        %v935 = vadd.f32 %v933, %v934
        %v936 = vmul.f32 %v935, 0.0009765625
        %v937 = vmul.f32 %v928, %v928
        %v938 = vsub.f32 %v936, %v937
        %v939 = vadd.f32 %v938, 1e-06
        %v940 = vrsqrt.pop %v939
        %v941 = vsub.f32 %v901, %v928
        %v942 = vsub.f32 %v903, %v928
        %v943 = vmul.f32 %v940, %v837
        %945 = vset.pattern.permute.xlu0 0
        %946 = vperm.xlu0 %945, %v943
        %v947 = vpop.permute.xlu0 %946
        %v949 = vmul.f32 %v941, %v947
        %v950 = vmul.f32 %v942, %v947
        %952 = vset.pattern.permute.xlu0 1
        %953 = vperm.xlu0 %952, %v837
        %v954 = vpop.permute.xlu0 %953
        %v956 = vadd.f32 %v949, %v954
        %v957 = vadd.f32 %v950, %v954
        %v958 = vxor.u32 %v956, 2147483648
        %v959 = vxor.u32 %v957, 2147483648
        %v960 = vmul.f32 %v958, 1.442695
        %v961 = vpow.pop %v960
        %v962 = vmul.f32 %v959, 1.442695
        %v963 = vpow.pop %v962
        %v964 = vadd.f32 %v961, 1.0
        %v965 = vadd.f32 %v963, 1.0
        %v966 = vrcp.pop %v964
        %v967 = vmul.f32 1.0, %v966
        %v968 = vrcp.pop %v965
        %v969 = vmul.f32 1.0, %v968
        %v970 = vmul.f32 %v956, %v967
        %v971 = vmul.f32 %v957, %v969
        %vm972 = vcmask 1047556
        %v973 = vsel %vm972, %v901, 0.0
        %v974 = vsel %vm972, %v903, 0.0
        %v975 = vadd.f32 %v973, %v974
        %976 = vadd.xlane.f32.xlu0 %v975
        %v977 = vpop.xlane.xlu0 %976
        %v978 = vsel %vm972, %v914, 0.0
        %v979 = vsel %vm972, %v915, 0.0
        %v980 = vadd.f32 %v978, %v979
        %981 = vadd.xlane.f32.xlu0 %v980
        %v982 = vpop.xlane.xlu0 %981
        %v984 = vrot.slane %v977, 4
        %v986 = vsel %vm586, %v984, 0.0
        %v987 = vrot.slane %v986, 4
        %v988 = vadd.f32 %v986, %v987
        %v989 = vrot.slane %v988, 2
        %v990 = vadd.f32 %v988, %v989
        %v991 = vrot.slane %v990, 1
        %v992 = vadd.f32 %v990, %v991
        %v993 = vmul.f32 %v992, 0.0009765625
        %v995 = vrot.slane %v982, 4
        %v997 = vsel %vm586, %v995, 0.0
        %v998 = vrot.slane %v997, 4
        %v999 = vadd.f32 %v997, %v998
        %v1000 = vrot.slane %v999, 2
        %v1001 = vadd.f32 %v999, %v1000
        %v1002 = vrot.slane %v1001, 1
        %v1003 = vadd.f32 %v1001, %v1002
        %v1004 = vmul.f32 %v1003, 0.0009765625
        %v1005 = vmul.f32 %v993, %v993
        %v1006 = vsub.f32 %v1004, %v1005
        %v1007 = vadd.f32 %v1006, 1e-06
        %v1008 = vrsqrt.pop %v1007
        %v1009 = vsub.f32 %v901, %v993
        %v1010 = vsub.f32 %v903, %v993
        %v1011 = vmul.f32 %v1008, %v837
        %1013 = vset.pattern.permute.xlu0 0
        %1014 = vperm.xlu0 %1013, %v1011
        %v1015 = vpop.permute.xlu0 %1014
        %v1017 = vmul.f32 %v1009, %v1015
        %v1018 = vmul.f32 %v1010, %v1015
        %v1019 = vadd.f32 %v1017, %v954
        %v1020 = vadd.f32 %v1018, %v954
        %v1021 = vxor.u32 %v1019, 2147483648
        %v1022 = vxor.u32 %v1020, 2147483648
        %v1023 = vmul.f32 %v1021, 1.442695
        %v1024 = vpow.pop %v1023
        %v1025 = vmul.f32 %v1022, 1.442695
        %v1026 = vpow.pop %v1025
        %v1027 = vadd.f32 %v1024, 1.0
        %v1028 = vadd.f32 %v1026, 1.0
        %v1029 = vrcp.pop %v1027
        %v1030 = vmul.f32 1.0, %v1029
        %v1031 = vrcp.pop %v1028
        %v1032 = vmul.f32 1.0, %v1031
        %v1033 = vmul.f32 %v1019, %v1030
        %v1034 = vmul.f32 %v1020, %v1032
        %v1035 = vsel %vm586, %v905, 0.0
        %v1036 = vsel %vm586, %v907, 0.0
        %v1037 = vadd.f32 %v1035, %v1036
        %1038 = vadd.xlane.f32.xlu0 %v1037
        %v1039 = vpop.xlane.xlu0 %1038
        %v1040 = vmul.f32 %v905, %v905
        %v1041 = vmul.f32 %v907, %v907
        %v1042 = vsel %vm586, %v1040, 0.0
        %v1043 = vsel %vm586, %v1041, 0.0
        %v1044 = vadd.f32 %v1042, %v1043
        %1045 = vadd.xlane.f32.xlu0 %v1044
        %v1046 = vpop.xlane.xlu0 %1045
        %v1047 = vsel %vm586, %v1039, 0.0
        %v1048 = vrot.slane %v1047, 4
        %v1049 = vadd.f32 %v1047, %v1048
        %v1050 = vrot.slane %v1049, 2
        %v1051 = vadd.f32 %v1049, %v1050
        %v1052 = vrot.slane %v1051, 1
        %v1053 = vadd.f32 %v1051, %v1052
        %v1054 = vmul.f32 %v1053, 0.0009765625
        %v1055 = vsel %vm586, %v1046, 0.0
        %v1056 = vrot.slane %v1055, 4
        %v1057 = vadd.f32 %v1055, %v1056
        %v1058 = vrot.slane %v1057, 2
        %v1059 = vadd.f32 %v1057, %v1058
        %v1060 = vrot.slane %v1059, 1
        %v1061 = vadd.f32 %v1059, %v1060
        %v1062 = vmul.f32 %v1061, 0.0009765625
        %v1063 = vmul.f32 %v1054, %v1054
        %v1064 = vsub.f32 %v1062, %v1063
        %v1065 = vadd.f32 %v1064, 1e-06
        %v1066 = vrsqrt.pop %v1065
        %v1067 = vsub.f32 %v905, %v1054
        %v1068 = vsub.f32 %v907, %v1054
        %v1069 = vmul.f32 %v1066, %v838
        %1071 = vset.pattern.permute.xlu0 0
        %1072 = vperm.xlu0 %1071, %v1069
        %v1073 = vpop.permute.xlu0 %1072
        %v1075 = vmul.f32 %v1067, %v1073
        %v1076 = vmul.f32 %v1068, %v1073
        %1078 = vset.pattern.permute.xlu0 1
        %1079 = vperm.xlu0 %1078, %v838
        %v1080 = vpop.permute.xlu0 %1079
        %v1082 = vadd.f32 %v1075, %v1080
        %v1083 = vadd.f32 %v1076, %v1080
        %v1084 = vxor.u32 %v1082, 2147483648
        %v1085 = vxor.u32 %v1083, 2147483648
        %v1086 = vmul.f32 %v1084, 1.442695
        %v1087 = vpow.pop %v1086
        %v1088 = vmul.f32 %v1085, 1.442695
        %v1089 = vpow.pop %v1088
        %v1090 = vadd.f32 %v1087, 1.0
        %v1091 = vadd.f32 %v1089, 1.0
        %v1092 = vrcp.pop %v1090
        %v1093 = vmul.f32 1.0, %v1092
        %v1094 = vrcp.pop %v1091
        %v1095 = vmul.f32 1.0, %v1094
        %v1096 = vmul.f32 %v1082, %v1093
        %v1097 = vmul.f32 %v1083, %v1095
        %v1098 = vsel %vm972, %v905, 0.0
        %v1099 = vsel %vm972, %v907, 0.0
        %v1100 = vadd.f32 %v1098, %v1099
        %1101 = vadd.xlane.f32.xlu0 %v1100
        %v1102 = vpop.xlane.xlu0 %1101
        %v1103 = vsel %vm972, %v1040, 0.0
        %v1104 = vsel %vm972, %v1041, 0.0
        %v1105 = vadd.f32 %v1103, %v1104
        %1106 = vadd.xlane.f32.xlu0 %v1105
        %v1107 = vpop.xlane.xlu0 %1106
        %v1109 = vrot.slane %v1102, 4
        %v1111 = vsel %vm586, %v1109, 0.0
        %v1112 = vrot.slane %v1111, 4
        %v1113 = vadd.f32 %v1111, %v1112
        %v1114 = vrot.slane %v1113, 2
        %v1115 = vadd.f32 %v1113, %v1114
        %v1116 = vrot.slane %v1115, 1
        %v1117 = vadd.f32 %v1115, %v1116
        %v1118 = vmul.f32 %v1117, 0.0009765625
        %v1120 = vrot.slane %v1107, 4
        %v1122 = vsel %vm586, %v1120, 0.0
        %v1123 = vrot.slane %v1122, 4
        %v1124 = vadd.f32 %v1122, %v1123
        %v1125 = vrot.slane %v1124, 2
        %v1126 = vadd.f32 %v1124, %v1125
        %v1127 = vrot.slane %v1126, 1
        %v1128 = vadd.f32 %v1126, %v1127
        %v1129 = vmul.f32 %v1128, 0.0009765625
        %v1130 = vmul.f32 %v1118, %v1118
        %v1131 = vsub.f32 %v1129, %v1130
        %v1132 = vadd.f32 %v1131, 1e-06
        %v1133 = vrsqrt.pop %v1132
        %v1134 = vsub.f32 %v905, %v1118
        %v1135 = vsub.f32 %v907, %v1118
        %v1136 = vmul.f32 %v1133, %v838
        %1138 = vset.pattern.permute.xlu0 0
        %1139 = vperm.xlu0 %1138, %v1136
        %v1140 = vpop.permute.xlu0 %1139
        %v1142 = vmul.f32 %v1134, %v1140
        %v1143 = vmul.f32 %v1135, %v1140
        %v1144 = vadd.f32 %v1142, %v1080
        %v1145 = vadd.f32 %v1143, %v1080
        %v1146 = vxor.u32 %v1144, 2147483648
        %v1147 = vxor.u32 %v1145, 2147483648
        %v1148 = vmul.f32 %v1146, 1.442695
        %v1149 = vpow.pop %v1148
        %v1150 = vmul.f32 %v1147, 1.442695
        %v1151 = vpow.pop %v1150
        %v1152 = vadd.f32 %v1149, 1.0
        %v1153 = vadd.f32 %v1151, 1.0
        %v1154 = vrcp.pop %v1152
        %v1155 = vmul.f32 1.0, %v1154
        %v1156 = vrcp.pop %v1153
        %v1157 = vmul.f32 1.0, %v1156
        %v1158 = vmul.f32 %v1144, %v1155
        %v1159 = vmul.f32 %v1145, %v1157
        %v1160 = vsel %vm586, %v970, %v1033
        %v1161 = vsel %vm586, %v971, %v1034
        %v1162 = vsel %vm586, %v1096, %v1158
        %v1163 = vsel %vm586, %v1097, %v1159
        %1164 = vrot.lane.b32.xlu0 %v1160, 17
        %v1165 = vpop.permute.xlu0 %1164
        %1166 = vrot.lane.b32.xlu0 %v1162, 17
        %v1167 = vpop.permute.xlu0 %1166
        %1168 = vrot.lane.b32.xlu0 %v1161, 17
        %v1169 = vpop.permute.xlu0 %1168
        %1170 = vrot.lane.b32.xlu0 %v1163, 17
        %v1171 = vpop.permute.xlu0 %1170
        %v1172 = vsel %vm598, %v1165, %v1169
        %v1173 = vsel %vm598, %v1167, %v1171
        %v1174 = vsel %vm598, %v1169, %v1165
        %v1175 = vsel %vm598, %v1171, %v1167
        %v1176 = vmul.f32 %v1174, %v606
        %v1177 = vmul.f32 %v1172, %v610
        %v1178 = vmul.f32 %v1175, %v606
        %v1179 = vmul.f32 %v1173, %v610
        %v1180 = vpack.c.bf16 %v1178, %v1176
        %v1181 = vpack.c.bf16 %v1179, %v1177
        %1182 = vrot.lane.b32.xlu0 %v1160, 16
        %v1183 = vpop.permute.xlu0 %1182
        %1184 = vrot.lane.b32.xlu0 %v1162, 16
        %v1185 = vpop.permute.xlu0 %1184
        %1186 = vrot.lane.b32.xlu0 %v1161, 16
        %v1187 = vpop.permute.xlu0 %1186
        %1188 = vrot.lane.b32.xlu0 %v1163, 16
        %v1189 = vpop.permute.xlu0 %1188
        %v1190 = vsel %vm621, %v1183, %v1187
        %v1191 = vsel %vm621, %v1185, %v1189
        %v1192 = vsel %vm621, %v1187, %v1183
        %v1193 = vsel %vm621, %v1189, %v1185
        %v1194 = vmul.f32 %v1192, %v630
        %v1195 = vmul.f32 %v1190, %v634
        %v1196 = vmul.f32 %v1193, %v630
        %v1197 = vmul.f32 %v1191, %v634
        %v1198 = vpack.c.bf16 %v1196, %v1194
        %v1199 = vpack.c.bf16 %v1197, %v1195
        %1200 = vrot.lane.b32.xlu0 %v1160, 15
        %v1201 = vpop.permute.xlu0 %1200
        %1202 = vrot.lane.b32.xlu0 %v1162, 15
        %v1203 = vpop.permute.xlu0 %1202
        %1204 = vrot.lane.b32.xlu0 %v1161, 15
        %v1205 = vpop.permute.xlu0 %1204
        %1206 = vrot.lane.b32.xlu0 %v1163, 15
        %v1207 = vpop.permute.xlu0 %1206
        %v1208 = vsel %vm645, %v1201, %v1205
        %v1209 = vsel %vm645, %v1203, %v1207
        %v1210 = vsel %vm645, %v1205, %v1201
        %v1211 = vsel %vm645, %v1207, %v1203
        %v1212 = vmul.f32 %v1210, %v654
        %v1213 = vmul.f32 %v1208, %v658
        %v1214 = vmul.f32 %v1211, %v654
        %v1215 = vmul.f32 %v1209, %v658
        %v1216 = vpack.c.bf16 %v1214, %v1212
        %v1217 = vpack.c.bf16 %v1215, %v1213
        %1218 = vrot.lane.b32.xlu0 %v1160, 1
        %v1219 = vpop.permute.xlu0 %1218
        %1220 = vrot.lane.b32.xlu0 %v1162, 1
        %v1221 = vpop.permute.xlu0 %1220
        %1222 = vrot.lane.b32.xlu0 %v1161, 1
        %v1223 = vpop.permute.xlu0 %1222
        %1224 = vrot.lane.b32.xlu0 %v1163, 1
        %v1225 = vpop.permute.xlu0 %1224
        %v1226 = vsel %vm669, %v1219, %v1223
        %v1227 = vsel %vm669, %v1221, %v1225
        %v1228 = vsel %vm669, %v1223, %v1219
        %v1229 = vsel %vm669, %v1225, %v1221
        %v1230 = vmul.f32 %v1228, %v678
        %v1231 = vmul.f32 %v1226, %v682
        %v1232 = vmul.f32 %v1229, %v678
        %v1233 = vmul.f32 %v1227, %v682
        %v1234 = vpack.c.bf16 %v1232, %v1230
        %v1235 = vpack.c.bf16 %v1233, %v1231
        %v1236 = vpack.c.bf16 %v1162, %v1160
        %v1237 = vpack.c.bf16 %v1163, %v1161
        %1238 = vrot.lane.b32.xlu0 %v1160, 127
        %v1239 = vpop.permute.xlu0 %1238
        %1240 = vrot.lane.b32.xlu0 %v1162, 127
        %v1241 = vpop.permute.xlu0 %1240
        %1242 = vrot.lane.b32.xlu0 %v1161, 127
        %v1243 = vpop.permute.xlu0 %1242
        %1244 = vrot.lane.b32.xlu0 %v1163, 127
        %v1245 = vpop.permute.xlu0 %1244
        %v1246 = vsel %vm695, %v1239, %v1243
        %v1247 = vsel %vm695, %v1241, %v1245
        %v1248 = vsel %vm695, %v1243, %v1239
        %v1249 = vsel %vm695, %v1245, %v1241
        %v1250 = vmul.f32 %v1246, %v704
        %v1251 = vmul.f32 %v1248, %v708
        %v1252 = vmul.f32 %v1247, %v704
        %v1253 = vmul.f32 %v1249, %v708
        %v1254 = vpack.c.bf16 %v1252, %v1250
        %v1255 = vpack.c.bf16 %v1253, %v1251
        %1256 = vrot.lane.b32.xlu0 %v1160, 113
        %v1257 = vpop.permute.xlu0 %1256
        %1258 = vrot.lane.b32.xlu0 %v1162, 113
        %v1259 = vpop.permute.xlu0 %1258
        %1260 = vrot.lane.b32.xlu0 %v1161, 113
        %v1261 = vpop.permute.xlu0 %1260
        %1262 = vrot.lane.b32.xlu0 %v1163, 113
        %v1263 = vpop.permute.xlu0 %1262
        %v1264 = vsel %vm719, %v1257, %v1261
        %v1265 = vsel %vm719, %v1259, %v1263
        %v1266 = vsel %vm719, %v1261, %v1257
        %v1267 = vsel %vm719, %v1263, %v1259
        %v1268 = vmul.f32 %v1264, %v728
        %v1269 = vmul.f32 %v1266, %v732
        %v1270 = vmul.f32 %v1265, %v728
        %v1271 = vmul.f32 %v1267, %v732
        %v1272 = vpack.c.bf16 %v1270, %v1268
        %v1273 = vpack.c.bf16 %v1271, %v1269
        %1274 = vrot.lane.b32.xlu0 %v1160, 112
        %v1275 = vpop.permute.xlu0 %1274
        %1276 = vrot.lane.b32.xlu0 %v1162, 112
        %v1277 = vpop.permute.xlu0 %1276
        %1278 = vrot.lane.b32.xlu0 %v1161, 112
        %v1279 = vpop.permute.xlu0 %1278
        %1280 = vrot.lane.b32.xlu0 %v1163, 112
        %v1281 = vpop.permute.xlu0 %1280
        %v1282 = vsel %vm743, %v1275, %v1279
        %v1283 = vsel %vm743, %v1277, %v1281
        %v1284 = vsel %vm743, %v1279, %v1275
        %v1285 = vsel %vm743, %v1281, %v1277
        %v1286 = vmul.f32 %v1282, %v752
        %v1287 = vmul.f32 %v1284, %v756
        %v1288 = vmul.f32 %v1283, %v752
        %v1289 = vmul.f32 %v1285, %v756
        %v1290 = vpack.c.bf16 %v1288, %v1286
        %v1291 = vpack.c.bf16 %v1289, %v1287
        %1292 = vrot.lane.b32.xlu0 %v1160, 111
        %v1293 = vpop.permute.xlu0 %1292
        %1294 = vrot.lane.b32.xlu0 %v1162, 111
        %v1295 = vpop.permute.xlu0 %1294
        %1296 = vrot.lane.b32.xlu0 %v1161, 111
        %v1297 = vpop.permute.xlu0 %1296
        %1298 = vrot.lane.b32.xlu0 %v1163, 111
        %v1299 = vpop.permute.xlu0 %1298
        %v1300 = vsel %vm767, %v1293, %v1297
        %v1301 = vsel %vm767, %v1295, %v1299
        %v1302 = vsel %vm767, %v1297, %v1293
        %v1303 = vsel %vm767, %v1299, %v1295
        %v1304 = vmul.f32 %v1300, %v776
        %v1305 = vmul.f32 %v1302, %v780
        %v1306 = vmul.f32 %v1301, %v776
        %v1307 = vmul.f32 %v1303, %v780
        %v1308 = vpack.c.bf16 %v1306, %v1304
        %v1309 = vpack.c.bf16 %v1307, %v1305
        %v1310 = vld [vmem:[%s6] sm:$0xff]
        %v1311 = vld [vmem:[%s6 + $0x8] sm:$0xff]
        %v1312 = vld [vmem:[%s7] sm:$0xf]
        %v1313 = vld [vmem:[%s7 + $0x4] sm:$0xf]
        %v1314 = vpack.c.bf16 %v328, %v328
        %v1315 = vpack.c.bf16 %v329, %v329
        %v1318 = vunpack.c.l.b16 %v1312
        %v1319 = vunpack.c.l.b16 %v1313
        %v1320 = vpack.c.b16 %v1319, %v1318
        %vm1321 = vcmask 64512
        %v1323 = vsel %vm1321, %v1320, 0
        %v1326 = vsel %vm586, %v1314, 0
        %v1329 = vsel %vm586, %v1315, 0
        %1331 = vmatprep.subr.bf16.mxu0 %v1329
        %1332 = vmatpush1.bf16.msra.mxu0 %v1326
        %1333 = vmatprep.subr.bf16.mxu0 0
        %1334 = vmatpush1.bf16.msra.mxu0 0
        %1335 = vmatprep.subr.bf16.mxu0 0
        %1336 = vmatpush1.bf16.msra.mxu0 0
        %1337 = vmatprep.subr.bf16.mxu0 0
        %1338 = vmatpush1.bf16.msra.mxu0 0
        %1339 = vmatprep.subr.bf16.mxu0 0
        %1340 = vmatpush1.bf16.msra.mxu0 0
        %1341 = vmatprep.subr.bf16.mxu0 0
        %1342 = vmatpush1.bf16.msra.mxu0 0
        %1343 = vmatprep.subr.bf16.mxu0 0
        %1344 = vmatpush1.bf16.msra.mxu0 0
        %1345 = vmatprep.subr.bf16.mxu0 0
        %1346 = vmatpush1.bf16.msra.mxu0 0
        %1347 = vmatprep.subr.bf16.mxu0 0
        %1348 = vmatpush1.bf16.msra.mxu0 0
        %1349 = vmatprep.subr.bf16.mxu0 0
        %1350 = vmatpush1.bf16.msra.mxu0 0
        %1351 = vmatprep.subr.bf16.mxu0 0
        %1352 = vmatpush1.bf16.msra.mxu0 0
        %1353 = vmatprep.subr.bf16.mxu0 0
        %1354 = vmatpush1.bf16.msra.mxu0 0
        %1355 = vmatprep.subr.bf16.mxu0 0
        %1356 = vmatpush1.bf16.msra.mxu0 0
        %1357 = vmatprep.subr.bf16.mxu0 0
        %1358 = vmatpush1.bf16.msra.mxu0 0
        %1359 = vmatprep.subr.bf16.mxu0 0
        %1360 = vmatpush1.bf16.msra.mxu0 0
        %1361 = vmatprep.subr.bf16.mxu0 0
        %1362 = vmatpush1.bf16.msra.mxu0 0
        %1363 = vmatprep.mubr.bf16.mxu0 0
        %1364 = vmatmul.mubr.bf16.gmra.mrb[0].mxu0 %v1323
        %v1365 = vpop.f32.mrb[0].mxu0
        %v1366 = vadd.f32 0.0, %v1365
        %v1367 = vpop.f32.mrb[0].mxu0
        %v1368 = vadd.f32 0.0, %v1367
        %v1369 = vpop.f32.mrb[0].mxu0
        %v1370 = vadd.f32 0.0, %v1369
        %v1371 = vpop.f32.mrb[0].mxu0
        %v1372 = vadd.f32 0.0, %v1371
        %1373 = vdwg.mxu0
        %v1376 = vunpack.c.l.b16 %v1310
        %v1377 = vunpack.c.h.b16 %v1310
        %v1378 = vunpack.c.l.b16 %v1311
        %v1379 = vunpack.c.h.b16 %v1311
        %v1380 = vpack.c.b16 %v1378, %v1376
        %v1381 = vpack.c.b16 %v1379, %v1377
        %vm1383 = vcmask 130048
        %v1385 = vsel %vm1383, %v1381, 0
        %1387 = vmatprep.subr.bf16.mxu0 %v1181
        %1388 = vmatpush1.bf16.msra.mxu0 %v1180
        %1389 = vmatprep.subr.bf16.mxu0 %v1199
        %1390 = vmatpush1.bf16.msra.mxu0 %v1198
        %1391 = vmatprep.subr.bf16.mxu0 %v1217
        %1392 = vmatpush1.bf16.msra.mxu0 %v1216
        %1393 = vmatprep.subr.bf16.mxu0 %v1235
        %1394 = vmatpush1.bf16.msra.mxu0 %v1234
        %1395 = vmatprep.subr.bf16.mxu0 %v1237
        %1396 = vmatpush1.bf16.msra.mxu0 %v1236
        %1397 = vmatprep.subr.bf16.mxu0 %v1255
        %1398 = vmatpush1.bf16.msra.mxu0 %v1254
        %1399 = vmatprep.subr.bf16.mxu0 %v1273
        %1400 = vmatpush1.bf16.msra.mxu0 %v1272
        %1401 = vmatprep.subr.bf16.mxu0 %v1291
        %1402 = vmatpush1.bf16.msra.mxu0 %v1290
        %1403 = vmatprep.subr.bf16.mxu0 %v1309
        %1404 = vmatpush1.bf16.msra.mxu0 %v1308
        %1405 = vmatprep.subr.bf16.mxu0 0
        %1406 = vmatpush1.bf16.msra.mxu0 0
        %1407 = vmatprep.subr.bf16.mxu0 0
        %1408 = vmatpush1.bf16.msra.mxu0 0
        %1409 = vmatprep.subr.bf16.mxu0 0
        %1410 = vmatpush1.bf16.msra.mxu0 0
        %1411 = vmatprep.subr.bf16.mxu0 0
        %1412 = vmatpush1.bf16.msra.mxu0 0
        %1413 = vmatprep.subr.bf16.mxu0 0
        %1414 = vmatpush1.bf16.msra.mxu0 0
        %1415 = vmatprep.subr.bf16.mxu0 0
        %1416 = vmatpush1.bf16.msra.mxu0 0
        %1417 = vmatprep.subr.bf16.mxu0 0
        %1418 = vmatpush1.bf16.msra.mxu0 0
        %1419 = vmatprep.mubr.bf16.mxu0 %v1385
        %1420 = vmatmul.mubr.bf16.gmra.mrb[0].mxu0 %v1380
        %v1421 = vpop.f32.mrb[0].mxu0
        %v1422 = vadd.f32 %v1366, %v1421
        %v1423 = vpop.f32.mrb[0].mxu0
        %v1424 = vadd.f32 %v1368, %v1423
        %v1425 = vpop.f32.mrb[0].mxu0
        %v1426 = vadd.f32 %v1370, %v1425
        %v1427 = vpop.f32.mrb[0].mxu0
        %v1428 = vadd.f32 %v1372, %v1427
        %1429 = vdwg.mxu0
        %1430 = vset.pattern.permute.xlu0 2
        %1431 = vperm.xlu0 %1430, %v837
        %v1432 = vpop.permute.xlu0 %1431
        %1434 = vset.pattern.permute.xlu0 2
        %1435 = vperm.xlu0 %1434, %v838
        %v1436 = vpop.permute.xlu0 %1435
        %v1438 = vadd.f32 %v1422, %v1432
        %v1439 = vadd.f32 %v1424, %v1432
        %v1440 = vadd.f32 %v1426, %v1436
        %v1441 = vadd.f32 %v1428, %v1436
        %1442 = vst [vmem:[%s314] sm:$0xff] %v1438
        %1443 = vst [vmem:[%s314 + $0x8] sm:$0xff] %v1439
        %1444 = vst [vmem:[%s314 + $0x10] sm:$0xff] %v1440
        %1445 = vst [vmem:[%s314 + $0x18] sm:$0xff] %v1441
        %s1446 = sand.u32 %s208, 1
        %s1447 = scalar_lea.sflag [#allocation3], %s1446
        %s1448 = sand.u32 %s208, 1
        %s1449 = smul.addr %s1448, 32
        %s1450 = scalar_lea.vmem [#allocation2], %s1449
        // Predicated region
        $region53: #{tpu_custom_call.1} parent=51 // pred_check
          %p1451 = pneg %p218
        $region54: #{tpu_custom_call.1} parent=51 // pred_check_branch
          %1453 = sbr.rel (%p1451) target = $region56
        $region55: #{tpu_custom_call.1} parent=51 // pred_region
          %s1454 = smul.u32 2, %s22
          %s1456 = ssub.s32 512, 512
          %1457 = vsyncadd %s1447, %s1456
          %s1458 = smul.addr %s1454, 128
          %s1459 = scalar_lea.hbm %s8, %s1458
          %s1460 = sshll.u32 %s1450, 4
          %s1461 = int_to_ptr.vmem [resolvable:$true] %s1460
          %1466 = dma.vmem_to_hbm [thread:$0]  %s1461, 512, %s1459, %s1447, 256, 512, 16
        $region56: #{tpu_custom_call.1} parent=51 // pred_fallthru
          _
      $region52: #{tpu_custom_call.1} parent=5 // pred_fallthru
        _
      %p1467 = scmp.le.s32.totalorder 2, %s17
      // Predicated region
      $region57: #{tpu_custom_call.1} parent=5 // pred_check
        %p1468 = pneg %p1467
      $region58: #{tpu_custom_call.1} parent=5 // pred_check_branch
        %1470 = sbr.rel (%p1468) target = $region60
      $region59: #{tpu_custom_call.1} parent=5 // pred_region
        %s1471 = ssub.s32 %s17, 2
        // Predicated region
        $region61: #{tpu_custom_call.1} parent=59 // pred_check
          %p1472 = pneg %p224
        $region62: #{tpu_custom_call.1} parent=59 // pred_check_branch
          %1474 = sbr.rel (%p1472) target = $region64
        $region63: #{tpu_custom_call.1} parent=59 // pred_region
          %s1475 = sand.u32 %s209, 1
          %s1476 = scalar_lea.sflag [#allocation3], %s1475
          %s1477 = sand.u32 %s209, 1
          %s1478 = smul.addr %s1477, 32
          %s1479 = scalar_lea.vmem [#allocation2], %s1478
          %1480 = dma.done %s1476, 512
        $region64: #{tpu_custom_call.1} parent=59 // pred_fallthru
          _
      $region60: #{tpu_custom_call.1} parent=5 // pred_fallthru
        _
    $region6: #{tpu_custom_call.1} parent=1 // loop_footer
      %s21 = sadd.s32 1, %s17
    $region7: #{tpu_custom_call.1} parent=1 // loop_footer_branch
      %16 = sbr.rel target = $region3
    $region8: #{tpu_custom_call.1} parent=1 // loop_exit
      _
    %1481 = vsyncpa [#allocation3], 1
    %s1482 = scalar_lea.sflag [#allocation3], 1
    %1483 = vsyncpa %s1482, 1

</llo_original>
